<compile_context>
chip_gen: v7x
topology: tpu7x:2x2x1
jax: 0.10.0
libtpu: 0.0.40
codegen_flags: <defaults>
</compile_context>

<pallas_src>
import functools
import math

import jax
import jax.numpy as jnp
from jax.experimental import pallas as pl
from jax.experimental.pallas import tpu as pltpu

_BN_EPS = 1e-5
_NEG_INF = -1e9  # large finite negative mask value (avoids inf-inf -> NaN paths)


# --------------------------------- kernel -----------------------------------

def _encoder_layer_kernel(x_ref, wqkv_ref, bqkv_ref, wo_ref, bo_ref,
                          w1_ref, b1_ref, w2_ref, b2_ref, o_ref,
                          *, n_heads, seq_len):
    """Fused EncoderLayer forward on a block of TB sequences.

    x_ref / o_ref : (TB*P, D) activation rows (P = seq_len patches/sequence)
    wqkv_ref      : (D, 3D) bf16 fused Q|K|V weights (scale folded into Q)
    bqkv_ref      : (1, 3D) f32 fused biases (scale folded into Q)
    wo_ref        : (D, D)  bf16 out-proj with norm1 folded   bo_ref : (1, D)
    w1_ref        : (D, F)  bf16 MLP in                       b1_ref : (1, F)
    w2_ref        : (F, D)  bf16 MLP out with norm2 folded    b2_ref : (1, D)
    """
    n_rows, d_model = x_ref.shape
    p = seq_len
    tb = n_rows // p
    d_k = d_model // n_heads

    x = x_ref[...].astype(jnp.float32)                      # residual path, f32
    x_bf = x.astype(jnp.bfloat16)                           # MXU operand

    # ---- fused QKV projection: one (N, D) x (D, 3D) bf16 MXU matmul --------
    qkv = jnp.dot(x_bf, wqkv_ref[...], preferred_element_type=jnp.float32)
    qkv = (qkv + bqkv_ref[...]).reshape(tb, p, 3 * d_model)  # f32

    # ---- additive causal mask, built once per block -------------------------
    row = jax.lax.broadcasted_iota(jnp.int32, (p, p), 0)
    col = jax.lax.broadcasted_iota(jnp.int32, (p, p), 1)
    mask_bias = jnp.where(col <= row, 0.0, _NEG_INF).astype(jnp.float32)

    # ---- multi-head causal attention: ALL heads in one batched contraction --
    # Regroup head-major along the (cheap) leading batch axis so one pair of
    # einsums (batch = n_heads*tb) covers every head; slices are static and
    # the single bf16 cast happens after the regroup.
    def heads(off):
        parts = [qkv[:, :, off + h * d_k: off + (h + 1) * d_k]
                 for h in range(n_heads)]
        return jnp.concatenate(parts, axis=0).astype(jnp.bfloat16)  # (H*TB,P,dk)

    qh = heads(0)
    kh = heads(d_model)
    vh = heads(2 * d_model)

    # 1/sqrt(d_k) already folded into the Q weight/bias on the host.
    s = jnp.einsum('bqd,bkd->bqk', qh, kh,
                   preferred_element_type=jnp.float32) + mask_bias
    s = s - jnp.max(s, axis=-1, keepdims=True)
    e = jnp.exp(s)
    attn = e * pl.reciprocal(jnp.sum(e, axis=-1, keepdims=True), approx=True)
    ctx_h = jnp.einsum('bqk,bkd->bqd', attn.astype(jnp.bfloat16), vh,
                       preferred_element_type=jnp.float32)   # (H*TB, P, dk)
    ctx = jnp.concatenate([ctx_h[h * tb:(h + 1) * tb] for h in range(n_heads)],
                          axis=-1)                            # (TB, P, D)
    ctx = ctx.reshape(n_rows, d_model).astype(jnp.bfloat16)

    # ---- output projection (BatchNorm1 folded in) + residual (f32) ---------
    x_attn = jnp.dot(ctx, wo_ref[...], preferred_element_type=jnp.float32)
    x_attn = x_attn + bo_ref[...] + x

    # ---- MLP: Linear -> ReLU -> Linear (BatchNorm2 folded) + residual ------
    h1 = jnp.dot(x_attn.astype(jnp.bfloat16), w1_ref[...],
                 preferred_element_type=jnp.float32)
    h1 = jnp.maximum(h1 + b1_ref[...], 0.0)
    out = jnp.dot(h1.astype(jnp.bfloat16), w2_ref[...],
                  preferred_element_type=jnp.float32)
    out = out + b2_ref[...] + x_attn

    o_ref[...] = out.astype(o_ref.dtype)


# ----------------------------- host-side helpers -----------------------------

def _fold_bn_into_linear(w, b, gamma, beta, mean, var, eps=_BN_EPS):
    """(w', b') such that BN_eval(x @ w + b) == x @ w' + b'."""
    scale = gamma / jnp.sqrt(var + eps)                 # (1, out)
    return w * scale, (b - mean) * scale + beta


def _prepare_layer_params(p, n_heads):
    d_model = p["wq"].shape[0]
    d_k = d_model // n_heads
    scale = 1.0 / math.sqrt(d_k)
    # Fold the attention scale into Q; fuse Q|K|V into one (D, 3D) matmul.
    wqkv = jnp.concatenate([p["wq"] * scale, p["wk"], p["wv"]], axis=1)
    bqkv = jnp.concatenate([p["bq"] * scale, p["bk"], p["bv"]], axis=1)
    wo, bo = _fold_bn_into_linear(p["wo"], p["bo"],
                                  p["g1"], p["be1"], p["m1"], p["v1"])
    w2, b2 = _fold_bn_into_linear(p["w_ff2"], p["c_ff2"],
                                  p["g2"], p["be2"], p["m2"], p["v2"])
    bf = lambda w: w.astype(jnp.bfloat16)               # MXU operands
    f32 = lambda b: b.astype(jnp.float32)               # biases stay f32
    return (bf(wqkv), f32(bqkv), bf(wo), f32(bo),
            bf(p["w_ff1"]), f32(p["c_ff1"]), bf(w2), f32(b2))


def _tpu_vmem_capacity_bytes():
    try:
        cap = getattr(pltpu.get_tpu_info(), "vmem_capacity_bytes", None)
        if cap:
            return int(cap)
    except Exception:
        pass
    return 128 * 1024 * 1024        # v5e / v6e default


def _auto_block_seqs(n_seq, seq_len, vmem_cap):
    """Sequences per grid step (tb)."""
    r8 = 8 // math.gcd(seq_len, 8)                 # tb granularity: tb*P % 8 == 0
    # Smaller rows/step target on v7x (64 MiB VMEM) than on v5e/v6e (128 MiB).
    target_rows = 2048 if vmem_cap >= 96 * 2**20 else 1024
    tb = min(n_seq, 512, max(1, target_rows // max(seq_len, 1)))
    # Keep >= 2 grid steps when possible (megacore sharding + DMA/compute overlap).
    if n_seq >= 2 * r8:
        tb = min(tb, (n_seq + 1) // 2)
    # Prefer MXU-tile-aligned block_rows (multiple of 256), else sublane-aligned.
    r256 = 256 // math.gcd(seq_len, 256)
    r = r256 if tb >= r256 else r8
    tb = max(r8, (tb // r) * r)
    # Prefer a tb that divides n_seq exactly (avoids HBM pad + trailing slice).
    lo = max(r8, tb // 2)
    for cand in range(tb, lo - 1, -1):
        if cand % r8 == 0 and n_seq % cand == 0:
            return cand
    return tb


def _vmem_limit_bytes(tb, seq_len, d_model, d_ff, n_heads, vmem_cap):
    rows = tb * seq_len
    io = 2 * 2 * rows * d_model * 4                              # double-buffered x/out (f32)
    weights = 2 * d_model * (3 * d_model + 2 * d_ff) \
              + 4 * (4 * d_model + d_ff)                         # bf16 weights (single buf) + f32 biases
    scores = 4 * tb * n_heads * seq_len * seq_len                # all-head score/prob tiles
    live = 4 * rows * (2 * d_model + 3 * d_model + d_ff) + scores  # x, qkv, h1, ...
    est = io + weights + 2 * live                                # 2x headroom for relayout copies
    if est <= 16 * 1024 * 1024:
        return None                                              # default scoped VMEM suffices
    cap = 48 * 2**20 if vmem_cap >= 96 * 2**20 else 36 * 2**20   # tighter cap on v7x
    return int(min(cap, max(32 * 2**20, est)))


def encoder_layer_forward(x, params, n_heads, *, block_seqs=None):
    """x: (batch, n_vars, num_patch, d_model) -> same shape (eval-mode layer)."""
    batch, n_vars, seq_len, d_model = x.shape
    if d_model % n_heads:
        raise ValueError(f"d_model={d_model} must be divisible by n_heads={n_heads}")
    n_seq = batch * n_vars

    vmem_cap = _tpu_vmem_capacity_bytes()
    tb = block_seqs or _auto_block_seqs(n_seq, seq_len, vmem_cap)
    n_seq_pad = pl.cdiv(n_seq, tb) * tb
    xb = x.reshape(n_seq, seq_len, d_model)
    if n_seq_pad != n_seq:                              # rare: only when no divisor tb exists
        xb = jnp.pad(xb, ((0, n_seq_pad - n_seq), (0, 0), (0, 0)))
    x2 = xb.reshape(n_seq_pad * seq_len, d_model)       # row = (sequence, patch)

    fused = _prepare_layer_params(params, n_heads)
    block_rows = tb * seq_len

    # Constant weights/biases: whole-array resident in VMEM, single-buffered
    # (no per-step pipelining / no double buffer).
    weight_spec = pl.BlockSpec(memory_space=pltpu.MemorySpace.VMEM)

    out2 = pl.pallas_call(
        functools.partial(_encoder_layer_kernel, n_heads=n_heads, seq_len=seq_len),
        out_shape=jax.ShapeDtypeStruct((n_seq_pad * seq_len, d_model), x.dtype),
        grid=(n_seq_pad // tb,),
        in_specs=[pl.BlockSpec((block_rows, d_model), lambda i: (i, 0))]
                 + [weight_spec] * len(fused),
        out_specs=pl.BlockSpec((block_rows, d_model), lambda i: (i, 0)),
        compiler_params=pltpu.CompilerParams(
            dimension_semantics=("parallel",),
            vmem_limit_bytes=_vmem_limit_bytes(tb, seq_len, d_model,
                                               params["w_ff1"].shape[1],
                                               n_heads, vmem_cap)),
    )(x2, *fused)

    out = out2.reshape(n_seq_pad, seq_len, d_model)[:n_seq]
    return out.reshape(batch, n_vars, seq_len, d_model)


def encoder_forward(x, layer_params, n_heads, *, block_seqs=None):
    # PyTorch Encoder.forward runs `output = layer(x)` for every layer (each
    # layer applied to the ORIGINAL x), so only the LAST layer's output is
    # observable; evaluating only that layer is semantically identical.
    if not layer_params:
        return x
    return encoder_layer_forward(x, layer_params[-1], n_heads, block_seqs=block_seqs)


# ------------------------------ init & reference -----------------------------

def _init_linear(key, fan_in, fan_out):
    """PyTorch nn.Linear init: U(-1/sqrt(fan_in), 1/sqrt(fan_in)); weight stored (in, out)."""
    kw, kb = jax.random.split(key)
    bound = 1.0 / math.sqrt(fan_in)
    w = jax.random.uniform(kw, (fan_in, fan_out), jnp.float32, -bound, bound)
    b = jax.random.uniform(kb, (1, fan_out), jnp.float32, -bound, bound)
    return w, b


def init_encoder_params(key, d_layers, d_model, n_heads, d_ff):
    layers = []
    for i in range(d_layers):
        ks = jax.random.split(jax.random.fold_in(key, i), 6)
        wq, bq = _init_linear(ks[0], d_model, d_model)
        wk, bk = _init_linear(ks[1], d_model, d_model)
        wv, bv = _init_linear(ks[2], d_model, d_model)
        wo, bo = _init_linear(ks[3], d_model, d_model)
        w1, c1 = _init_linear(ks[4], d_model, d_ff)
        w2, c2 = _init_linear(ks[5], d_ff, d_model)
        ones = jnp.ones((1, d_model), jnp.float32)
        zeros = jnp.zeros((1, d_model), jnp.float32)
        layers.append(dict(
            wq=wq, bq=bq, wk=wk, bk=bk, wv=wv, bv=bv, wo=wo, bo=bo,
            g1=ones, be1=zeros, m1=zeros, v1=ones,
            w_ff1=w1, c_ff1=c1, w_ff2=w2, c_ff2=c2,
            g2=ones, be2=zeros, m2=zeros, v2=ones,
        ))
    return layers


def _encoder_layer_reference(x, p, n_heads):
    """Pure-JAX fp32 eval-mode reference (unfolded params) mirroring the PyTorch math."""
    batch, n_vars, P, D = x.shape
    d_k = D // n_heads
    xb = x.reshape(batch * n_vars, P, D).astype(jnp.float32)
    q = xb @ p["wq"] + p["bq"]
    k = xb @ p["wk"] + p["bk"]
    v = xb @ p["wv"] + p["bv"]

    def split(t):
        return t.reshape(t.shape[0], P, n_heads, d_k).transpose(0, 2, 1, 3)

    qh, kh, vh = split(q), split(k), split(v)
    mask = jnp.where(jnp.arange(P)[None, :] <= jnp.arange(P)[:, None], 0.0, -jnp.inf)
    s = jnp.einsum('bhqd,bhkd->bhqk', qh, kh) / math.sqrt(d_k) + mask
    attn = jax.nn.softmax(s, axis=-1)
    ctx = jnp.einsum('bhqk,bhkd->bhqd', attn, vh).transpose(0, 2, 1, 3)
    ctx = ctx.reshape(-1, P, D)
    attn_out = ctx @ p["wo"] + p["bo"]

    def bn(t, g, be, m, var):
        return (t - m) / jnp.sqrt(var + _BN_EPS) * g + be

    x_attn = bn(attn_out, p["g1"], p["be1"], p["m1"], p["v1"]) + xb
    h1 = jax.nn.relu(x_attn @ p["w_ff1"] + p["c_ff1"])
    ff = h1 @ p["w_ff2"] + p["c_ff2"]
    out = bn(ff, p["g2"], p["be2"], p["m2"], p["v2"]) + x_attn
    return out.reshape(batch, n_vars, P, D)


if __name__ == "__main__":
    # x: (batch, n_vars, num_patch, d_model)
    batch, n_vars, num_patch, d_model = 2, 3, 8, 32
    n_heads, d_ff, d_layers = 4, 64, 2

    key = jax.random.PRNGKey(0)
    kx, kp = jax.random.split(key)
    x = jax.random.normal(kx, (batch, n_vars, num_patch, d_model), jnp.float32)
    params = init_encoder_params(kp, d_layers, d_model, n_heads, d_ff)

    out = jax.block_until_ready(encoder_forward(x, params, n_heads))

    assert out.shape == (batch, n_vars, num_patch, d_model)
    assert bool(jnp.all(jnp.isfinite(out)))

    # Cross-check the fused/folded bf16-MXU kernel against the fp32 eval reference.
    ref = _encoder_layer_reference(x, params[-1], n_heads)
    assert jnp.allclose(out, ref, rtol=5e-2, atol=5e-2), \
        float(jnp.max(jnp.abs(out - ref)))

    print("KERNEL_OK")
</pallas_src>

<mosaic_0001>
module attributes {stable_mosaic.version = 11 : i64} {
  func.func @_encoder_layer_kernel(%arg0: i32, %arg1: memref<24x32xf32, #tpu.memory_space<vmem>>, %arg2: memref<32x96xbf16, #tpu.memory_space<vmem>>, %arg3: memref<1x96xf32, #tpu.memory_space<vmem>>, %arg4: memref<32x32xbf16, #tpu.memory_space<vmem>>, %arg5: memref<1x32xf32, #tpu.memory_space<vmem>>, %arg6: memref<32x64xbf16, #tpu.memory_space<vmem>>, %arg7: memref<1x64xf32, #tpu.memory_space<vmem>>, %arg8: memref<64x32xbf16, #tpu.memory_space<vmem>>, %arg9: memref<1x32xf32, #tpu.memory_space<vmem>>, %arg10: memref<24x32xf32, #tpu.memory_space<vmem>>) attributes {dimension_semantics = [#tpu.dimension_semantics<parallel>], iteration_bounds = array<i64: 2>, scalar_prefetch = 0 : i64, scratch_operands = 0 : i64, tpu.core_type = #tpu.core_type<tc>, window_params = [{transform_indices = @transform_0, window_bounds = array<i64: 24, 32>}, {pipeline_mode = #tpu.pipeline_mode<synchronous>, transform_indices = @transform_1, window_bounds = array<i64: 32, 96>}, {pipeline_mode = #tpu.pipeline_mode<synchronous>, transform_indices = @transform_2, window_bounds = array<i64: 1, 96>}, {pipeline_mode = #tpu.pipeline_mode<synchronous>, transform_indices = @transform_3, window_bounds = array<i64: 32, 32>}, {pipeline_mode = #tpu.pipeline_mode<synchronous>, transform_indices = @transform_4, window_bounds = array<i64: 1, 32>}, {pipeline_mode = #tpu.pipeline_mode<synchronous>, transform_indices = @transform_5, window_bounds = array<i64: 32, 64>}, {pipeline_mode = #tpu.pipeline_mode<synchronous>, transform_indices = @transform_6, window_bounds = array<i64: 1, 64>}, {pipeline_mode = #tpu.pipeline_mode<synchronous>, transform_indices = @transform_7, window_bounds = array<i64: 64, 32>}, {pipeline_mode = #tpu.pipeline_mode<synchronous>, transform_indices = @transform_8, window_bounds = array<i64: 1, 32>}, {transform_indices = @transform_9, window_bounds = array<i64: 24, 32>}]} {
    %c0 = arith.constant 0 : index
    %c0_0 = arith.constant 0 : index
    %0 = vector.load %arg1[%c0, %c0_0] : memref<24x32xf32, #tpu.memory_space<vmem>>, vector<24x32xf32>
    %1 = arith.truncf %0 : vector<24x32xf32> to vector<24x32xbf16>
    %c0_1 = arith.constant 0 : index
    %c0_2 = arith.constant 0 : index
    %2 = vector.load %arg2[%c0_1, %c0_2] : memref<32x96xbf16, #tpu.memory_space<vmem>>, vector<32x96xbf16>
    %cst = arith.constant dense<0.000000e+00> : vector<24x96xf32>
    %3 = tpu.matmul %1, %2, %cst {dimension_numbers = #tpu.dot_dimension_numbers<[1], [0], [0], [1], [0, 0, 1, 1], [], []>} : vector<24x32xbf16>, vector<32x96xbf16>, vector<24x96xf32> -> vector<24x96xf32>
    %c0_3 = arith.constant 0 : index
    %c0_4 = arith.constant 0 : index
    %4 = vector.load %arg3[%c0_3, %c0_4] : memref<1x96xf32, #tpu.memory_space<vmem>>, vector<1x96xf32>
    %5 = vector.broadcast %4 : vector<1x96xf32> to vector<24x96xf32>
    %6 = arith.addf %3, %5 : vector<24x96xf32>
    %7 = vector.shape_cast %6 : vector<24x96xf32> to vector<3x8x96xf32>
    %8 = tpu.iota {dimensions = array<i32: 0>} : vector<8x8xi32>
    %9 = tpu.iota {dimensions = array<i32: 1>} : vector<8x8xi32>
    %10 = arith.cmpi sle, %9, %8 : vector<8x8xi32>
    %cst_5 = arith.constant 0.000000e+00 : f32
    %cst_6 = arith.constant -1.000000e+09 : f32
    %11 = vector.broadcast %cst_5 : f32 to vector<8x8xf32>
    %12 = vector.broadcast %cst_6 : f32 to vector<8x8xf32>
    %13 = arith.select %10, %11, %12 : vector<8x8xi1>, vector<8x8xf32>
    %14 = vector.extract_strided_slice %7 {offsets = [0, 0, 0], sizes = [3, 8, 8], strides = [1, 1, 1]} : vector<3x8x96xf32> to vector<3x8x8xf32>
    %15 = vector.extract_strided_slice %7 {offsets = [0, 0, 8], sizes = [3, 8, 8], strides = [1, 1, 1]} : vector<3x8x96xf32> to vector<3x8x8xf32>
    %16 = vector.extract_strided_slice %7 {offsets = [0, 0, 16], sizes = [3, 8, 8], strides = [1, 1, 1]} : vector<3x8x96xf32> to vector<3x8x8xf32>
    %17 = vector.extract_strided_slice %7 {offsets = [0, 0, 24], sizes = [3, 8, 8], strides = [1, 1, 1]} : vector<3x8x96xf32> to vector<3x8x8xf32>
    %18 = tpu.concatenate %14, %15, %16, %17 in 0 : vector<3x8x8xf32>, vector<3x8x8xf32>, vector<3x8x8xf32>, vector<3x8x8xf32> -> vector<12x8x8xf32>
    %19 = arith.truncf %18 : vector<12x8x8xf32> to vector<12x8x8xbf16>
    %20 = vector.extract_strided_slice %7 {offsets = [0, 0, 32], sizes = [3, 8, 8], strides = [1, 1, 1]} : vector<3x8x96xf32> to vector<3x8x8xf32>
    %21 = vector.extract_strided_slice %7 {offsets = [0, 0, 40], sizes = [3, 8, 8], strides = [1, 1, 1]} : vector<3x8x96xf32> to vector<3x8x8xf32>
    %22 = vector.extract_strided_slice %7 {offsets = [0, 0, 48], sizes = [3, 8, 8], strides = [1, 1, 1]} : vector<3x8x96xf32> to vector<3x8x8xf32>
    %23 = vector.extract_strided_slice %7 {offsets = [0, 0, 56], sizes = [3, 8, 8], strides = [1, 1, 1]} : vector<3x8x96xf32> to vector<3x8x8xf32>
    %24 = tpu.concatenate %20, %21, %22, %23 in 0 : vector<3x8x8xf32>, vector<3x8x8xf32>, vector<3x8x8xf32>, vector<3x8x8xf32> -> vector<12x8x8xf32>
    %25 = arith.truncf %24 : vector<12x8x8xf32> to vector<12x8x8xbf16>
    %26 = vector.extract_strided_slice %7 {offsets = [0, 0, 64], sizes = [3, 8, 8], strides = [1, 1, 1]} : vector<3x8x96xf32> to vector<3x8x8xf32>
    %27 = vector.extract_strided_slice %7 {offsets = [0, 0, 72], sizes = [3, 8, 8], strides = [1, 1, 1]} : vector<3x8x96xf32> to vector<3x8x8xf32>
    %28 = vector.extract_strided_slice %7 {offsets = [0, 0, 80], sizes = [3, 8, 8], strides = [1, 1, 1]} : vector<3x8x96xf32> to vector<3x8x8xf32>
    %29 = vector.extract_strided_slice %7 {offsets = [0, 0, 88], sizes = [3, 8, 8], strides = [1, 1, 1]} : vector<3x8x96xf32> to vector<3x8x8xf32>
    %30 = tpu.concatenate %26, %27, %28, %29 in 0 : vector<3x8x8xf32>, vector<3x8x8xf32>, vector<3x8x8xf32>, vector<3x8x8xf32> -> vector<12x8x8xf32>
    %31 = arith.truncf %30 : vector<12x8x8xf32> to vector<12x8x8xbf16>
    "tpu.trace_start"() <{level = 10 : i32, message = "bqd,bkd->bqk"}> : () -> ()
    %cst_7 = arith.constant dense<0.000000e+00> : vector<12x8x8xf32>
    %32 = tpu.matmul %19, %25, %cst_7 {dimension_numbers = #tpu.dot_dimension_numbers<[2], [2], [1], [1], [0, 0, 0, 1, 1, 1], [0], [0]>} : vector<12x8x8xbf16>, vector<12x8x8xbf16>, vector<12x8x8xf32> -> vector<12x8x8xf32>
    "tpu.trace_stop"() : () -> ()
    %33 = vector.shape_cast %13 : vector<8x8xf32> to vector<1x8x8xf32>
    %34 = vector.broadcast %33 : vector<1x8x8xf32> to vector<12x8x8xf32>
    %35 = arith.addf %32, %34 : vector<12x8x8xf32>
    %cst_8 = arith.constant dense<0xFF800000> : vector<12x8xf32>
    %36 = vector.multi_reduction <maximumf>, %35, %cst_8 [2] : vector<12x8x8xf32> to vector<12x8xf32>
    %37 = vector.shape_cast %36 : vector<12x8xf32> to vector<12x8x1xf32>
    %38 = vector.broadcast %37 : vector<12x8x1xf32> to vector<12x8x8xf32>
    %39 = arith.subf %35, %38 : vector<12x8x8xf32>
    %40 = math.exp %39 : vector<12x8x8xf32>
    %cst_9 = arith.constant dense<0.000000e+00> : vector<12x8xf32>
    %41 = vector.multi_reduction <add>, %40, %cst_9 [2] : vector<12x8x8xf32> to vector<12x8xf32>
    %42 = vector.shape_cast %41 : vector<12x8xf32> to vector<12x8x1xf32>
    %43 = tpu.reciprocal %42 {approx = true} : vector<12x8x1xf32> -> vector<12x8x1xf32>
    %44 = vector.broadcast %43 : vector<12x8x1xf32> to vector<12x8x8xf32>
    %45 = arith.mulf %40, %44 : vector<12x8x8xf32>
    %46 = arith.truncf %45 : vector<12x8x8xf32> to vector<12x8x8xbf16>
    "tpu.trace_start"() <{level = 10 : i32, message = "bqk,bkd->bqd"}> : () -> ()
    %cst_10 = arith.constant dense<0.000000e+00> : vector<12x8x8xf32>
    %47 = tpu.matmul %46, %31, %cst_10 {dimension_numbers = #tpu.dot_dimension_numbers<[2], [1], [1], [2], [0, 0, 0, 1, 1, 2], [0], [0]>} : vector<12x8x8xbf16>, vector<12x8x8xbf16>, vector<12x8x8xf32> -> vector<12x8x8xf32>
    "tpu.trace_stop"() : () -> ()
    %48 = vector.extract_strided_slice %47 {offsets = [0, 0, 0], sizes = [3, 8, 8], strides = [1, 1, 1]} : vector<12x8x8xf32> to vector<3x8x8xf32>
    %49 = vector.extract_strided_slice %47 {offsets = [3, 0, 0], sizes = [3, 8, 8], strides = [1, 1, 1]} : vector<12x8x8xf32> to vector<3x8x8xf32>
    %50 = vector.extract_strided_slice %47 {offsets = [6, 0, 0], sizes = [3, 8, 8], strides = [1, 1, 1]} : vector<12x8x8xf32> to vector<3x8x8xf32>
    %51 = vector.extract_strided_slice %47 {offsets = [9, 0, 0], sizes = [3, 8, 8], strides = [1, 1, 1]} : vector<12x8x8xf32> to vector<3x8x8xf32>
    %52 = tpu.concatenate %48, %49, %50, %51 in 2 : vector<3x8x8xf32>, vector<3x8x8xf32>, vector<3x8x8xf32>, vector<3x8x8xf32> -> vector<3x8x32xf32>
    %53 = vector.shape_cast %52 : vector<3x8x32xf32> to vector<24x32xf32>
    %54 = arith.truncf %53 : vector<24x32xf32> to vector<24x32xbf16>
    %c0_11 = arith.constant 0 : index
    %c0_12 = arith.constant 0 : index
    %55 = vector.load %arg4[%c0_11, %c0_12] : memref<32x32xbf16, #tpu.memory_space<vmem>>, vector<32x32xbf16>
    %cst_13 = arith.constant dense<0.000000e+00> : vector<24x32xf32>
    %56 = tpu.matmul %54, %55, %cst_13 {dimension_numbers = #tpu.dot_dimension_numbers<[1], [0], [0], [1], [0, 0, 1, 1], [], []>} : vector<24x32xbf16>, vector<32x32xbf16>, vector<24x32xf32> -> vector<24x32xf32>
    %c0_14 = arith.constant 0 : index
    %c0_15 = arith.constant 0 : index
    %57 = vector.load %arg5[%c0_14, %c0_15] : memref<1x32xf32, #tpu.memory_space<vmem>>, vector<1x32xf32>
    %58 = vector.broadcast %57 : vector<1x32xf32> to vector<24x32xf32>
    %59 = arith.addf %56, %58 : vector<24x32xf32>
    %60 = arith.addf %59, %0 : vector<24x32xf32>
    %61 = arith.truncf %60 : vector<24x32xf32> to vector<24x32xbf16>
    %c0_16 = arith.constant 0 : index
    %c0_17 = arith.constant 0 : index
    %62 = vector.load %arg6[%c0_16, %c0_17] : memref<32x64xbf16, #tpu.memory_space<vmem>>, vector<32x64xbf16>
    %cst_18 = arith.constant dense<0.000000e+00> : vector<24x64xf32>
    %63 = tpu.matmul %61, %62, %cst_18 {dimension_numbers = #tpu.dot_dimension_numbers<[1], [0], [0], [1], [0, 0, 1, 1], [], []>} : vector<24x32xbf16>, vector<32x64xbf16>, vector<24x64xf32> -> vector<24x64xf32>
    %c0_19 = arith.constant 0 : index
    %c0_20 = arith.constant 0 : index
    %64 = vector.load %arg7[%c0_19, %c0_20] : memref<1x64xf32, #tpu.memory_space<vmem>>, vector<1x64xf32>
    %65 = vector.broadcast %64 : vector<1x64xf32> to vector<24x64xf32>
    %66 = arith.addf %63, %65 : vector<24x64xf32>
    %cst_21 = arith.constant 0.000000e+00 : f32
    %67 = vector.broadcast %cst_21 : f32 to vector<24x64xf32>
    %68 = arith.maximumf %66, %67 : vector<24x64xf32>
    %69 = arith.truncf %68 : vector<24x64xf32> to vector<24x64xbf16>
    %c0_22 = arith.constant 0 : index
    %c0_23 = arith.constant 0 : index
    %70 = vector.load %arg8[%c0_22, %c0_23] : memref<64x32xbf16, #tpu.memory_space<vmem>>, vector<64x32xbf16>
    %cst_24 = arith.constant dense<0.000000e+00> : vector<24x32xf32>
    %71 = tpu.matmul %69, %70, %cst_24 {dimension_numbers = #tpu.dot_dimension_numbers<[1], [0], [0], [1], [0, 0, 1, 1], [], []>} : vector<24x64xbf16>, vector<64x32xbf16>, vector<24x32xf32> -> vector<24x32xf32>
    %c0_25 = arith.constant 0 : index
    %c0_26 = arith.constant 0 : index
    %72 = vector.load %arg9[%c0_25, %c0_26] : memref<1x32xf32, #tpu.memory_space<vmem>>, vector<1x32xf32>
    %73 = vector.broadcast %72 : vector<1x32xf32> to vector<24x32xf32>
    %74 = arith.addf %71, %73 : vector<24x32xf32>
    %75 = arith.addf %74, %60 : vector<24x32xf32>
    %c0_27 = arith.constant 0 : index
    %c0_28 = arith.constant 0 : index
    %76 = vector.load %arg10[%c0_27, %c0_28] : memref<24x32xf32, #tpu.memory_space<vmem>>, vector<24x32xf32>
    tpu.vector_store %arg10[%c0_27, %c0_28], %75 {strides = array<i32>} : memref<24x32xf32, #tpu.memory_space<vmem>>, vector<24x32xf32>,
    return
  }
  func.func @transform_0(%arg0: i32) -> (i32, i32) {
    %c0_i32 = arith.constant 0 : i32
    %c0_i32_0 = arith.constant 0 : i32
    return %arg0, %c0_i32 : i32, i32
  }
  func.func @transform_1(%arg0: i32) -> (i32, i32) {
    %c0_i32 = arith.constant 0 : i32
    %c0_i32_0 = arith.constant 0 : i32
    %c0_i32_1 = arith.constant 0 : i32
    return %c0_i32, %c0_i32_0 : i32, i32
  }
  func.func @transform_2(%arg0: i32) -> (i32, i32) {
    %c0_i32 = arith.constant 0 : i32
    %c0_i32_0 = arith.constant 0 : i32
    %c0_i32_1 = arith.constant 0 : i32
    return %c0_i32, %c0_i32_0 : i32, i32
  }
  func.func @transform_3(%arg0: i32) -> (i32, i32) {
    %c0_i32 = arith.constant 0 : i32
    %c0_i32_0 = arith.constant 0 : i32
    %c0_i32_1 = arith.constant 0 : i32
    return %c0_i32, %c0_i32_0 : i32, i32
  }
  func.func @transform_4(%arg0: i32) -> (i32, i32) {
    %c0_i32 = arith.constant 0 : i32
    %c0_i32_0 = arith.constant 0 : i32
    %c0_i32_1 = arith.constant 0 : i32
    return %c0_i32, %c0_i32_0 : i32, i32
  }
  func.func @transform_5(%arg0: i32) -> (i32, i32) {
    %c0_i32 = arith.constant 0 : i32
    %c0_i32_0 = arith.constant 0 : i32
    %c0_i32_1 = arith.constant 0 : i32
    return %c0_i32, %c0_i32_0 : i32, i32
  }
  func.func @transform_6(%arg0: i32) -> (i32, i32) {
    %c0_i32 = arith.constant 0 : i32
    %c0_i32_0 = arith.constant 0 : i32
    %c0_i32_1 = arith.constant 0 : i32
    return %c0_i32, %c0_i32_0 : i32, i32
  }
  func.func @transform_7(%arg0: i32) -> (i32, i32) {
    %c0_i32 = arith.constant 0 : i32
    %c0_i32_0 = arith.constant 0 : i32
    %c0_i32_1 = arith.constant 0 : i32
    return %c0_i32, %c0_i32_0 : i32, i32
  }
  func.func @transform_8(%arg0: i32) -> (i32, i32) {
    %c0_i32 = arith.constant 0 : i32
    %c0_i32_0 = arith.constant 0 : i32
    %c0_i32_1 = arith.constant 0 : i32
    return %c0_i32, %c0_i32_0 : i32, i32
  }
  func.func @transform_9(%arg0: i32) -> (i32, i32) {
    %c0_i32 = arith.constant 0 : i32
    %c0_i32_0 = arith.constant 0 : i32
    return %arg0, %c0_i32 : i32, i32
  }
}

</mosaic_0001>

<llo_original>
// kernel: tpu_custom_call.1
$region0: #{tpu_custom_call.1}
  #allocation0 [shape = 'u32[]', space=smem, size = 0x4, offset = 0x4, fixed_abs, tag = 'smem constant byte address 0x4 - core index']
  #allocation1 [shape = 'u32[144,128]{1,0:T(1,128)}', space=vmem, size = 0x12000, scoped, tag = 'internal scratch']
  %s0 = inlined_call_operand.vmem [shape: f32[48,32], index: 0, kind: input, shape index: {}]
  %s1 = inlined_call_operand.vmem [shape: bf16[32,96], index: 1, kind: input, shape index: {}]
  %s2 = inlined_call_operand.vmem [shape: f32[1,96], index: 2, kind: input, shape index: {}]
  %s3 = inlined_call_operand.vmem [shape: bf16[32,32], index: 3, kind: input, shape index: {}]
  %s4 = inlined_call_operand.vmem [shape: f32[1,32], index: 4, kind: input, shape index: {}]
  %s5 = inlined_call_operand.vmem [shape: bf16[32,64], index: 5, kind: input, shape index: {}]
  %s6 = inlined_call_operand.vmem [shape: f32[1,64], index: 6, kind: input, shape index: {}]
  %s7 = inlined_call_operand.vmem [shape: bf16[64,32], index: 7, kind: input, shape index: {}]
  %s8 = inlined_call_operand.vmem [shape: f32[1,32], index: 8, kind: input, shape index: {}]
  %s9 = inlined_call_operand.vmem [shape: f32[48,32], index: 9, kind: output, shape index: {}]
  %s10 = sld [smem:[#allocation0]]
  $region69: #{tpu_custom_call.1} parent=0
    _
  %s12 = ssub.s32 1, %s10
  %s13 = scalar_select 0, %s12, %s10
  loop: start=0, step=1, limit=4
  $region2: #{tpu_custom_call.1} parent=0 // loop_pre_header
    _
  $region3: #{tpu_custom_call.1} parent=0 // loop_header
    %s15 = sphi 0, %s19
    %p16 = scmp.ge.s32.totalorder %s15, 4
    %s25 = sphi 0, %s27
    %s28 = sphi 0, %s25
    %s29 = sphi 0, %s28
    %s45 = sphi 0, %s29
    %s49 = sphi 0, %s49
    %s51 = sphi 0, %s49
    %s52 = sphi 0, %s51
    %s66 = sphi 0, %s52
    %s70 = sphi 0, %s70
    %s72 = sphi 0, %s70
    %s73 = sphi 0, %s72
    %s87 = sphi 0, %s73
    %s91 = sphi 0, %s91
    %s93 = sphi 0, %s91
    %s94 = sphi 0, %s93
    %s108 = sphi 0, %s94
    %s112 = sphi 0, %s112
    %s114 = sphi 0, %s112
    %s115 = sphi 0, %s114
    %s129 = sphi 0, %s115
    %s133 = sphi 0, %s133
    %s135 = sphi 0, %s133
    %s136 = sphi 0, %s135
    %s150 = sphi 0, %s136
    %s154 = sphi 0, %s154
    %s156 = sphi 0, %s154
    %s157 = sphi 0, %s156
    %s171 = sphi 0, %s157
    %s175 = sphi 0, %s175
    %s177 = sphi 0, %s175
    %s178 = sphi 0, %s177
    %s192 = sphi 0, %s178
    %s196 = sphi 0, %s196
    %s198 = sphi 0, %s196
    %s199 = sphi 0, %s198
    %s213 = sphi 0, %s199
    %s219 = sphi 0, %s221
    %s222 = sphi 0, %s219
    %s223 = sphi 0, %s222
    %s239 = sphi 0, %s223
  $region4: #{tpu_custom_call.1} parent=0 // loop_header_branch
    %18 = sbr.rel (%p16) target = $region8
  $region5: #{tpu_custom_call.1} parent=0 // loop_body
    %s20 = ssub.s32 %s15, 1
    %s21 = ssub.s32 %s15, 2
    %s22 = sadd.s32 %s15, 1
    %s23 = ssub.s32 %s15, %s22
    %p24 = scmp.eq.s32.totalorder %s23, 0
    %s26 = sadd.s32 %s25, 1
    %s27 = scalar_select %p24, %s25, %s26
    %p30 = pneg %p24
    %p31 = scmp.eq.s32.totalorder %s15, 1
    %p32 = por %p30, %p31
    %p33 = scmp.ne.s32.totalorder %s25, %s28
    %p34 = scmp.eq.s32.totalorder %s15, 0
    %p35 = por %p33, %p34
    %p36 = scmp.ne.s32.totalorder %s25, %s28
    %p37 = scmp.eq.s32.totalorder %s20, 1
    %p38 = por %p36, %p37
    %p39 = scmp.ne.s32.totalorder %s28, %s29
    %p40 = scmp.eq.s32.totalorder %s20, 0
    %p41 = por %p39, %p40
    %p42 = scmp.ne.s32.totalorder %s28, %s29
    %p43 = scmp.eq.s32.totalorder %s21, 1
    %p44 = por %p42, %p43
    %p46 = scmp.ne.s32.totalorder %s29, %s45
    %p47 = scmp.eq.s32.totalorder %s21, 0
    %p48 = por %p46, %p47
    %s50 = sadd.s32 %s49, 1
    %p53 = scmp.eq.s32.totalorder %s15, 1
    %p54 = scmp.ne.s32.totalorder %s49, %s51
    %p55 = scmp.eq.s32.totalorder %s15, 0
    %p56 = por %p54, %p55
    %p57 = scmp.ne.s32.totalorder %s49, %s51
    %p58 = scmp.eq.s32.totalorder %s20, 1
    %p59 = por %p57, %p58
    %p60 = scmp.ne.s32.totalorder %s51, %s52
    %p61 = scmp.eq.s32.totalorder %s20, 0
    %p62 = por %p60, %p61
    %p63 = scmp.ne.s32.totalorder %s51, %s52
    %p64 = scmp.eq.s32.totalorder %s21, 1
    %p65 = por %p63, %p64
    %p67 = scmp.ne.s32.totalorder %s52, %s66
    %p68 = scmp.eq.s32.totalorder %s21, 0
    %p69 = por %p67, %p68
    %s71 = sadd.s32 %s70, 1
    %p74 = scmp.eq.s32.totalorder %s15, 1
    %p75 = scmp.ne.s32.totalorder %s70, %s72
    %p76 = scmp.eq.s32.totalorder %s15, 0
    %p77 = por %p75, %p76
    %p78 = scmp.ne.s32.totalorder %s70, %s72
    %p79 = scmp.eq.s32.totalorder %s20, 1
    %p80 = por %p78, %p79
    %p81 = scmp.ne.s32.totalorder %s72, %s73
    %p82 = scmp.eq.s32.totalorder %s20, 0
    %p83 = por %p81, %p82
    %p84 = scmp.ne.s32.totalorder %s72, %s73
    %p85 = scmp.eq.s32.totalorder %s21, 1
    %p86 = por %p84, %p85
    %p88 = scmp.ne.s32.totalorder %s73, %s87
    %p89 = scmp.eq.s32.totalorder %s21, 0
    %p90 = por %p88, %p89
    %s92 = sadd.s32 %s91, 1
    %p95 = scmp.eq.s32.totalorder %s15, 1
    %p96 = scmp.ne.s32.totalorder %s91, %s93
    %p97 = scmp.eq.s32.totalorder %s15, 0
    %p98 = por %p96, %p97
    %p99 = scmp.ne.s32.totalorder %s91, %s93
    %p100 = scmp.eq.s32.totalorder %s20, 1
    %p101 = por %p99, %p100
    %p102 = scmp.ne.s32.totalorder %s93, %s94
    %p103 = scmp.eq.s32.totalorder %s20, 0
    %p104 = por %p102, %p103
    %p105 = scmp.ne.s32.totalorder %s93, %s94
    %p106 = scmp.eq.s32.totalorder %s21, 1
    %p107 = por %p105, %p106
    %p109 = scmp.ne.s32.totalorder %s94, %s108
    %p110 = scmp.eq.s32.totalorder %s21, 0
    %p111 = por %p109, %p110
    %s113 = sadd.s32 %s112, 1
    %p116 = scmp.eq.s32.totalorder %s15, 1
    %p117 = scmp.ne.s32.totalorder %s112, %s114
    %p118 = scmp.eq.s32.totalorder %s15, 0
    %p119 = por %p117, %p118
    %p120 = scmp.ne.s32.totalorder %s112, %s114
    %p121 = scmp.eq.s32.totalorder %s20, 1
    %p122 = por %p120, %p121
    %p123 = scmp.ne.s32.totalorder %s114, %s115
    %p124 = scmp.eq.s32.totalorder %s20, 0
    %p125 = por %p123, %p124
    %p126 = scmp.ne.s32.totalorder %s114, %s115
    %p127 = scmp.eq.s32.totalorder %s21, 1
    %p128 = por %p126, %p127
    %p130 = scmp.ne.s32.totalorder %s115, %s129
    %p131 = scmp.eq.s32.totalorder %s21, 0
    %p132 = por %p130, %p131
    %s134 = sadd.s32 %s133, 1
    %p137 = scmp.eq.s32.totalorder %s15, 1
    %p138 = scmp.ne.s32.totalorder %s133, %s135
    %p139 = scmp.eq.s32.totalorder %s15, 0
    %p140 = por %p138, %p139
    %p141 = scmp.ne.s32.totalorder %s133, %s135
    %p142 = scmp.eq.s32.totalorder %s20, 1
    %p143 = por %p141, %p142
    %p144 = scmp.ne.s32.totalorder %s135, %s136
    %p145 = scmp.eq.s32.totalorder %s20, 0
    %p146 = por %p144, %p145
    %p147 = scmp.ne.s32.totalorder %s135, %s136
    %p148 = scmp.eq.s32.totalorder %s21, 1
    %p149 = por %p147, %p148
    %p151 = scmp.ne.s32.totalorder %s136, %s150
    %p152 = scmp.eq.s32.totalorder %s21, 0
    %p153 = por %p151, %p152
    %s155 = sadd.s32 %s154, 1
    %p158 = scmp.eq.s32.totalorder %s15, 1
    %p159 = scmp.ne.s32.totalorder %s154, %s156
    %p160 = scmp.eq.s32.totalorder %s15, 0
    %p161 = por %p159, %p160
    %p162 = scmp.ne.s32.totalorder %s154, %s156
    %p163 = scmp.eq.s32.totalorder %s20, 1
    %p164 = por %p162, %p163
    %p165 = scmp.ne.s32.totalorder %s156, %s157
    %p166 = scmp.eq.s32.totalorder %s20, 0
    %p167 = por %p165, %p166
    %p168 = scmp.ne.s32.totalorder %s156, %s157
    %p169 = scmp.eq.s32.totalorder %s21, 1
    %p170 = por %p168, %p169
    %p172 = scmp.ne.s32.totalorder %s157, %s171
    %p173 = scmp.eq.s32.totalorder %s21, 0
    %p174 = por %p172, %p173
    %s176 = sadd.s32 %s175, 1
    %p179 = scmp.eq.s32.totalorder %s15, 1
    %p180 = scmp.ne.s32.totalorder %s175, %s177
    %p181 = scmp.eq.s32.totalorder %s15, 0
    %p182 = por %p180, %p181
    %p183 = scmp.ne.s32.totalorder %s175, %s177
    %p184 = scmp.eq.s32.totalorder %s20, 1
    %p185 = por %p183, %p184
    %p186 = scmp.ne.s32.totalorder %s177, %s178
    %p187 = scmp.eq.s32.totalorder %s20, 0
    %p188 = por %p186, %p187
    %p189 = scmp.ne.s32.totalorder %s177, %s178
    %p190 = scmp.eq.s32.totalorder %s21, 1
    %p191 = por %p189, %p190
    %p193 = scmp.ne.s32.totalorder %s178, %s192
    %p194 = scmp.eq.s32.totalorder %s21, 0
    %p195 = por %p193, %p194
    %s197 = sadd.s32 %s196, 1
    %p200 = scmp.eq.s32.totalorder %s15, 1
    %p201 = scmp.ne.s32.totalorder %s196, %s198
    %p202 = scmp.eq.s32.totalorder %s15, 0
    %p203 = por %p201, %p202
    %p204 = scmp.ne.s32.totalorder %s196, %s198
    %p205 = scmp.eq.s32.totalorder %s20, 1
    %p206 = por %p204, %p205
    %p207 = scmp.ne.s32.totalorder %s198, %s199
    %p208 = scmp.eq.s32.totalorder %s20, 0
    %p209 = por %p207, %p208
    %p210 = scmp.ne.s32.totalorder %s198, %s199
    %p211 = scmp.eq.s32.totalorder %s21, 1
    %p212 = por %p210, %p211
    %p214 = scmp.ne.s32.totalorder %s199, %s213
    %p215 = scmp.eq.s32.totalorder %s21, 0
    %p216 = por %p214, %p215
    %s217 = ssub.s32 %s15, %s22
    %p218 = scmp.eq.s32.totalorder %s217, 0
    %s220 = sadd.s32 %s219, 1
    %s221 = scalar_select %p218, %s219, %s220
    %p224 = pneg %p218
    %p225 = scmp.eq.s32.totalorder %s15, 1
    %p226 = por %p224, %p225
    %p227 = scmp.ne.s32.totalorder %s219, %s222
    %p228 = scmp.eq.s32.totalorder %s15, 0
    %p229 = por %p227, %p228
    %p230 = scmp.ne.s32.totalorder %s219, %s222
    %p231 = scmp.eq.s32.totalorder %s20, 1
    %p232 = por %p230, %p231
    %p233 = scmp.ne.s32.totalorder %s222, %s223
    %p234 = scmp.eq.s32.totalorder %s20, 0
    %p235 = por %p233, %p234
    %p236 = scmp.ne.s32.totalorder %s222, %s223
    %p237 = scmp.eq.s32.totalorder %s21, 1
    %p238 = por %p236, %p237
    %p240 = scmp.ne.s32.totalorder %s223, %s239
    %p241 = scmp.eq.s32.totalorder %s21, 0
    %p242 = por %p240, %p241
    %p243 = scmp.le.s32.totalorder 1, %s15
    %p244 = scmp.lt.s32.totalorder %s15, 3
    %p245 = pnand %p243, %p244
    %p246 = pneg %p245
    // Predicated region
    $region9: #{tpu_custom_call.1} parent=5 // pred_check
      _
    $region10: #{tpu_custom_call.1} parent=5 // pred_check_branch
      %248 = sbr.rel (%p245) target = $region12
    $region11: #{tpu_custom_call.1} parent=5 // pred_region
      %s249 = ssub.s32 %s15, 1
      // Predicated region
      $region13: #{tpu_custom_call.1} parent=11 // pred_check
        %p250 = pneg %p62
      $region14: #{tpu_custom_call.1} parent=11 // pred_check_branch
        %252 = sbr.rel (%p250) target = $region16
      $region15: #{tpu_custom_call.1} parent=11 // pred_region
        _
      $region16: #{tpu_custom_call.1} parent=11 // pred_fallthru
        _
      // Predicated region
      $region17: #{tpu_custom_call.1} parent=11 // pred_check
        %p253 = pneg %p83
      $region18: #{tpu_custom_call.1} parent=11 // pred_check_branch
        %255 = sbr.rel (%p253) target = $region20
      $region19: #{tpu_custom_call.1} parent=11 // pred_region
        _
      $region20: #{tpu_custom_call.1} parent=11 // pred_fallthru
        _
      // Predicated region
      $region21: #{tpu_custom_call.1} parent=11 // pred_check
        %p256 = pneg %p104
      $region22: #{tpu_custom_call.1} parent=11 // pred_check_branch
        %258 = sbr.rel (%p256) target = $region24
      $region23: #{tpu_custom_call.1} parent=11 // pred_region
        _
      $region24: #{tpu_custom_call.1} parent=11 // pred_fallthru
        _
      // Predicated region
      $region25: #{tpu_custom_call.1} parent=11 // pred_check
        %p259 = pneg %p125
      $region26: #{tpu_custom_call.1} parent=11 // pred_check_branch
        %261 = sbr.rel (%p259) target = $region28
      $region27: #{tpu_custom_call.1} parent=11 // pred_region
        _
      $region28: #{tpu_custom_call.1} parent=11 // pred_fallthru
        _
      // Predicated region
      $region29: #{tpu_custom_call.1} parent=11 // pred_check
        %p262 = pneg %p146
      $region30: #{tpu_custom_call.1} parent=11 // pred_check_branch
        %264 = sbr.rel (%p262) target = $region32
      $region31: #{tpu_custom_call.1} parent=11 // pred_region
        _
      $region32: #{tpu_custom_call.1} parent=11 // pred_fallthru
        _
      // Predicated region
      $region33: #{tpu_custom_call.1} parent=11 // pred_check
        %p265 = pneg %p167
      $region34: #{tpu_custom_call.1} parent=11 // pred_check_branch
        %267 = sbr.rel (%p265) target = $region36
      $region35: #{tpu_custom_call.1} parent=11 // pred_region
        _
      $region36: #{tpu_custom_call.1} parent=11 // pred_fallthru
        _
      // Predicated region
      $region37: #{tpu_custom_call.1} parent=11 // pred_check
        %p268 = pneg %p188
      $region38: #{tpu_custom_call.1} parent=11 // pred_check_branch
        %270 = sbr.rel (%p268) target = $region40
      $region39: #{tpu_custom_call.1} parent=11 // pred_region
        _
      $region40: #{tpu_custom_call.1} parent=11 // pred_fallthru
        _
      // Predicated region
      $region41: #{tpu_custom_call.1} parent=11 // pred_check
        %p271 = pneg %p209
      $region42: #{tpu_custom_call.1} parent=11 // pred_check_branch
        %273 = sbr.rel (%p271) target = $region44
      $region43: #{tpu_custom_call.1} parent=11 // pred_region
        _
      $region44: #{tpu_custom_call.1} parent=11 // pred_fallthru
        _
    $region12: #{tpu_custom_call.1} parent=5 // pred_fallthru
      _
    %p274 = scmp.lt.s32.totalorder %s15, 2
    // Predicated region
    $region45: #{tpu_custom_call.1} parent=5 // pred_check
      %p275 = pneg %p274
    $region46: #{tpu_custom_call.1} parent=5 // pred_check_branch
      %277 = sbr.rel (%p275) target = $region48
    $region47: #{tpu_custom_call.1} parent=5 // pred_region
      // Predicated region
      $region49: #{tpu_custom_call.1} parent=47 // pred_check
        %p278 = pneg %p35
      $region50: #{tpu_custom_call.1} parent=47 // pred_check_branch
        %280 = sbr.rel (%p278) target = $region52
      $region51: #{tpu_custom_call.1} parent=47 // pred_region
        %s281 = smul.u32 3, %s15
        %p282 = scmp.lt.s32.totalorder %s281, 5
        %s283 = scalar_select %p282, %s281, 5
        %s284 = smul.addr %s283, 8
        %s285 = scalar_lea.vmem %s0, %s284
        %s286 = smul.u32 3, %s15
      $region52: #{tpu_custom_call.1} parent=47 // pred_fallthru
        _
    $region48: #{tpu_custom_call.1} parent=5 // pred_fallthru
      _
    %p287 = scmp.le.s32.totalorder 1, %s15
    %p288 = scmp.lt.s32.totalorder %s15, 3
    %p289 = pnand %p287, %p288
    %p290 = pneg %p289
    // Predicated region
    $region53: #{tpu_custom_call.1} parent=5 // pred_check
      _
    $region54: #{tpu_custom_call.1} parent=5 // pred_check_branch
      %292 = sbr.rel (%p289) target = $region56
    $region55: #{tpu_custom_call.1} parent=5 // pred_region
      %s293 = ssub.s32 %s15, 1
      %s294 = smul.u32 3, %s20
      %p295 = scmp.lt.s32.totalorder %s294, 5
      %s296 = scalar_select %p295, %s294, 5
      %s297 = smul.addr %s296, 8
      %s298 = scalar_lea.vmem %s0, %s297
      %p299 = pneg %p41
      %p300 = pneg %p38
      %p301 = pneg %p62
      %p302 = pneg %p59
      %p303 = pneg %p83
      %p304 = pneg %p80
      %p305 = pneg %p104
      %p306 = pneg %p101
      %p307 = pneg %p125
      %p308 = pneg %p122
      %p309 = pneg %p146
      %p310 = pneg %p143
      %p311 = pneg %p167
      %p312 = pneg %p164
      %p313 = pneg %p188
      %p314 = pneg %p185
      %p315 = pneg %p209
      %p316 = pneg %p206
      %p317 = pneg %p235
      %p318 = pneg %p232
      %s319 = smul.u32 3, %s20
      %p320 = scmp.lt.s32.totalorder %s319, 5
      %s321 = scalar_select %p320, %s319, 5
      %s322 = smul.addr %s321, 8
      %s323 = scalar_lea.vmem %s9, %s322
      %s324 = smul.u32 3, %s20
      %p325 = scmp.lt.s32.totalorder %s324, 5
      %s326 = scalar_select %p325, %s324, 5
      %s327 = smul.addr %s326, 8
      %s328 = scalar_lea.vmem %s0, %s327
      %s329 = smul.u32 3, %s20
      %s330 = smul.u32 3, %s20
      %p331 = scmp.lt.s32.totalorder %s330, 5
      %s332 = scalar_select %p331, %s330, 5
      %s333 = smul.addr %s332, 8
      %s334 = scalar_lea.vmem %s9, %s333
      %s335 = smul.u32 3, %s20
      %v337 = vld [vmem:[%s328] sm:$0xff]
      %v338 = vld [vmem:[%s328 + $0x8] sm:$0xff]
      %v339 = vld [vmem:[%s328 + $0x10] sm:$0xff]
      %v340 = vpack.c.bf16 %v338, %v337
      %v341 = vpack.c.bf16 %v339, %v339
      %v342 = vld [vmem:[%s1] sm:$0xf]
      %v343 = vld [vmem:[%s1 + $0x4] sm:$0xf]
      %v344 = vld [vmem:[%s1 + $0x8] sm:$0xf]
      %v345 = vld [vmem:[%s1 + $0xc] sm:$0xf]
      %v346 = vld [vmem:[%s2] sm:$0x1]
      %v348 = vlaneseq
      %v349 = vshrl.u32 %v348, 7
      %v350 = vsub.s32 0, %v349
      %v351 = vrot.slane %v346, %v350
      %v357 = vunpack.c.l.b16 %v342
      %v358 = vunpack.c.l.b16 %v343
      %v359 = vunpack.c.l.b16 %v344
      %v360 = vunpack.c.l.b16 %v345
      %v361 = vpack.c.b16 %v358, %v357
      %v362 = vpack.c.b16 %v360, %v359
      %vm365 = vcmask 261120
      %v367 = vsel %vm365, %v340, 0
      %v370 = vsel %vm365, %v341, 0
      %372 = vmatprep.subr.bf16.mxu0 0
      %373 = vmatpush1.bf16.msra.mxu0 %v361
      %374 = vmatprep.subr.bf16.mxu0 0
      %375 = vmatpush1.bf16.msra.mxu0 %v362
      %376 = vmatprep.subr.bf16.mxu0 0
      %377 = vmatpush1.bf16.msra.mxu0 0
      %378 = vmatprep.subr.bf16.mxu0 0
      %379 = vmatpush1.bf16.msra.mxu0 0
      %380 = vmatprep.subr.bf16.mxu0 0
      %381 = vmatpush1.bf16.msra.mxu0 0
      %382 = vmatprep.subr.bf16.mxu0 0
      %383 = vmatpush1.bf16.msra.mxu0 0
      %384 = vmatprep.subr.bf16.mxu0 0
      %385 = vmatpush1.bf16.msra.mxu0 0
      %386 = vmatprep.subr.bf16.mxu0 0
      %387 = vmatpush1.bf16.msra.mxu0 0
      %388 = vmatprep.subr.bf16.mxu0 0
      %389 = vmatpush1.bf16.msra.mxu0 0
      %390 = vmatprep.subr.bf16.mxu0 0
      %391 = vmatpush1.bf16.msra.mxu0 0
      %392 = vmatprep.subr.bf16.mxu0 0
      %393 = vmatpush1.bf16.msra.mxu0 0
      %394 = vmatprep.subr.bf16.mxu0 0
      %395 = vmatpush1.bf16.msra.mxu0 0
      %396 = vmatprep.subr.bf16.mxu0 0
      %397 = vmatpush1.bf16.msra.mxu0 0
      %398 = vmatprep.subr.bf16.mxu0 0
      %399 = vmatpush1.bf16.msra.mxu0 0
      %400 = vmatprep.subr.bf16.mxu0 0
      %401 = vmatpush1.bf16.msra.mxu0 0
      %402 = vmatprep.subr.bf16.mxu0 0
      %403 = vmatpush1.bf16.msra.mxu0 0
      %404 = vmatprep.mubr.bf16.mxu0 0
      %405 = vmatmul.mubr.bf16.gmra.mrb[0].mxu0 %v367
      %v406 = vpop.f32.mrb[0].mxu0
      %v407 = vadd.f32 %v351, %v406
      %v408 = vpop.f32.mrb[0].mxu0
      %v409 = vpop.f32.mrb[0].mxu0
      %v410 = vadd.f32 %v351, %v409
      %v411 = vpop.f32.mrb[0].mxu0
      %412 = vmatprep.mubr.bf16.mxu0 0
      %413 = vmatmul.mubr.bf16.gmra.mrb[0].mxu0 %v370
      %v414 = vpop.f32.mrb[0].mxu0
      %v415 = vadd.f32 %v351, %v414
      %v416 = vpop.f32.mrb[0].mxu0
      %v417 = vpop.f32.mrb[0].mxu0
      %v418 = vpop.f32.mrb[0].mxu0
      %419 = vdwg.mxu0
      %v420 = vlaneseq
      %v421 = vshrl.u32 %v420, 7
      %v422 = vlaneseq
      %v423 = vand.u32 %v422, 127
      %vm424 = vcmp.le.s32.totalorder %v423, %v421
      %v425 = vsel %vm424, 0.0, -1e+09
      %429 = vrot.lane.b32.xlu0 %v407, 120
      %v430 = vpop.permute.xlu0 %429
      %431 = vrot.lane.b32.xlu0 %v410, 120
      %v432 = vpop.permute.xlu0 %431
      %433 = vrot.lane.b32.xlu0 %v415, 120
      %v434 = vpop.permute.xlu0 %433
      %438 = vrot.lane.b32.xlu0 %v407, 112
      %v439 = vpop.permute.xlu0 %438
      %440 = vrot.lane.b32.xlu0 %v410, 112
      %v441 = vpop.permute.xlu0 %440
      %442 = vrot.lane.b32.xlu0 %v415, 112
      %v443 = vpop.permute.xlu0 %442
      %447 = vrot.lane.b32.xlu0 %v407, 104
      %v448 = vpop.permute.xlu0 %447
      %449 = vrot.lane.b32.xlu0 %v410, 104
      %v450 = vpop.permute.xlu0 %449
      %451 = vrot.lane.b32.xlu0 %v415, 104
      %v452 = vpop.permute.xlu0 %451
      %v456 = vpack.c.bf16 %v407, %v407
      %v457 = vpack.c.bf16 %v410, %v410
      %v458 = vpack.c.bf16 %v415, %v415
      %v459 = vpack.c.bf16 %v430, %v430
      %v460 = vpack.c.bf16 %v432, %v432
      %v461 = vpack.c.bf16 %v434, %v434
      %v462 = vpack.c.bf16 %v439, %v439
      %v463 = vpack.c.bf16 %v441, %v441
      %v464 = vpack.c.bf16 %v443, %v443
      %v465 = vpack.c.bf16 %v448, %v448
      %v466 = vpack.c.bf16 %v450, %v450
      %v467 = vpack.c.bf16 %v452, %v452
      %469 = vrot.lane.b32.xlu0 %v456, 96
      %v470 = vpop.permute.xlu0 %469
      %vm471 = vcmask 64512
      %v473 = vsel %vm471, %v456, 0
      %v476 = vsel %vm471, %v470, 0
      %478 = vmatprep.subr.bf16.mxu0 0
      %479 = vmatpush1.bf16.xpose.msra.mxu0 %v476
      %480 = vmatprep.subr.bf16.mxu0 0
      %481 = vmatpush1.bf16.xpose.msra.mxu0 0
      %482 = vmatprep.subr.bf16.mxu0 0
      %483 = vmatpush1.bf16.xpose.msra.mxu0 0
      %484 = vmatprep.subr.bf16.mxu0 0
      %485 = vmatpush1.bf16.xpose.msra.mxu0 0
      %486 = vmatprep.subr.bf16.mxu0 0
      %487 = vmatpush1.bf16.xpose.msra.mxu0 0
      %488 = vmatprep.subr.bf16.mxu0 0
      %489 = vmatpush1.bf16.xpose.msra.mxu0 0
      %490 = vmatprep.subr.bf16.mxu0 0
      %491 = vmatpush1.bf16.xpose.msra.mxu0 0
      %492 = vmatprep.subr.bf16.mxu0 0
      %493 = vmatpush1.bf16.xpose.msra.mxu0 0
      %494 = vmatprep.subr.bf16.mxu0 0
      %495 = vmatpush1.bf16.xpose.msra.mxu0 0
      %496 = vmatprep.subr.bf16.mxu0 0
      %497 = vmatpush1.bf16.xpose.msra.mxu0 0
      %498 = vmatprep.subr.bf16.mxu0 0
      %499 = vmatpush1.bf16.xpose.msra.mxu0 0
      %500 = vmatprep.subr.bf16.mxu0 0
      %501 = vmatpush1.bf16.xpose.msra.mxu0 0
      %502 = vmatprep.subr.bf16.mxu0 0
      %503 = vmatpush1.bf16.xpose.msra.mxu0 0
      %504 = vmatprep.subr.bf16.mxu0 0
      %505 = vmatpush1.bf16.xpose.msra.mxu0 0
      %506 = vmatprep.subr.bf16.mxu0 0
      %507 = vmatpush1.bf16.xpose.msra.mxu0 0
      %508 = vmatprep.subr.bf16.mxu0 0
      %509 = vmatpush1.bf16.xpose.msra.mxu0 0
      %510 = vmatprep.mubr.bf16.mxu0 0
      %511 = vmatmul.mubr.bf16.gmra.mrb[0].mxu0 %v473
      %v512 = vpop.f32.mrb[0].mxu0
      %v513 = vadd.f32 %v425, %v512
      %v514 = vpop.f32.mrb[0].mxu0
      %v515 = vpop.f32.mrb[0].mxu0
      %v516 = vpop.f32.mrb[0].mxu0
      %517 = vdwg.mxu0
      %519 = vrot.lane.b32.xlu0 %v457, 96
      %v520 = vpop.permute.xlu0 %519
      %v522 = vsel %vm471, %v457, 0
      %v525 = vsel %vm471, %v520, 0
      %527 = vmatprep.subr.bf16.mxu0 0
      %528 = vmatpush1.bf16.xpose.msra.mxu0 %v525
      %529 = vmatprep.subr.bf16.mxu0 0
      %530 = vmatpush1.bf16.xpose.msra.mxu0 0
      %531 = vmatprep.subr.bf16.mxu0 0
      %532 = vmatpush1.bf16.xpose.msra.mxu0 0
      %533 = vmatprep.subr.bf16.mxu0 0
      %534 = vmatpush1.bf16.xpose.msra.mxu0 0
      %535 = vmatprep.subr.bf16.mxu0 0
      %536 = vmatpush1.bf16.xpose.msra.mxu0 0
      %537 = vmatprep.subr.bf16.mxu0 0
      %538 = vmatpush1.bf16.xpose.msra.mxu0 0
      %539 = vmatprep.subr.bf16.mxu0 0
      %540 = vmatpush1.bf16.xpose.msra.mxu0 0
      %541 = vmatprep.subr.bf16.mxu0 0
      %542 = vmatpush1.bf16.xpose.msra.mxu0 0
      %543 = vmatprep.subr.bf16.mxu0 0
      %544 = vmatpush1.bf16.xpose.msra.mxu0 0
      %545 = vmatprep.subr.bf16.mxu0 0
      %546 = vmatpush1.bf16.xpose.msra.mxu0 0
      %547 = vmatprep.subr.bf16.mxu0 0
      %548 = vmatpush1.bf16.xpose.msra.mxu0 0
      %549 = vmatprep.subr.bf16.mxu0 0
      %550 = vmatpush1.bf16.xpose.msra.mxu0 0
      %551 = vmatprep.subr.bf16.mxu0 0
      %552 = vmatpush1.bf16.xpose.msra.mxu0 0
      %553 = vmatprep.subr.bf16.mxu0 0
      %554 = vmatpush1.bf16.xpose.msra.mxu0 0
      %555 = vmatprep.subr.bf16.mxu0 0
      %556 = vmatpush1.bf16.xpose.msra.mxu0 0
      %557 = vmatprep.subr.bf16.mxu0 0
      %558 = vmatpush1.bf16.xpose.msra.mxu0 0
      %559 = vmatprep.mubr.bf16.mxu0 0
      %560 = vmatmul.mubr.bf16.gmra.mrb[0].mxu0 %v522
      %v561 = vpop.f32.mrb[0].mxu0
      %v562 = vadd.f32 %v425, %v561
      %v563 = vpop.f32.mrb[0].mxu0
      %v564 = vpop.f32.mrb[0].mxu0
      %v565 = vpop.f32.mrb[0].mxu0
      %566 = vdwg.mxu0
      %568 = vrot.lane.b32.xlu0 %v458, 96
      %v569 = vpop.permute.xlu0 %568
      %v571 = vsel %vm471, %v458, 0
      %v574 = vsel %vm471, %v569, 0
      %576 = vmatprep.subr.bf16.mxu0 0
      %577 = vmatpush1.bf16.xpose.msra.mxu0 %v574
      %578 = vmatprep.subr.bf16.mxu0 0
      %579 = vmatpush1.bf16.xpose.msra.mxu0 0
      %580 = vmatprep.subr.bf16.mxu0 0
      %581 = vmatpush1.bf16.xpose.msra.mxu0 0
      %582 = vmatprep.subr.bf16.mxu0 0
      %583 = vmatpush1.bf16.xpose.msra.mxu0 0
      %584 = vmatprep.subr.bf16.mxu0 0
      %585 = vmatpush1.bf16.xpose.msra.mxu0 0
      %586 = vmatprep.subr.bf16.mxu0 0
      %587 = vmatpush1.bf16.xpose.msra.mxu0 0
      %588 = vmatprep.subr.bf16.mxu0 0
      %589 = vmatpush1.bf16.xpose.msra.mxu0 0
      %590 = vmatprep.subr.bf16.mxu0 0
      %591 = vmatpush1.bf16.xpose.msra.mxu0 0
      %592 = vmatprep.subr.bf16.mxu0 0
      %593 = vmatpush1.bf16.xpose.msra.mxu0 0
      %594 = vmatprep.subr.bf16.mxu0 0
      %595 = vmatpush1.bf16.xpose.msra.mxu0 0
      %596 = vmatprep.subr.bf16.mxu0 0
      %597 = vmatpush1.bf16.xpose.msra.mxu0 0
      %598 = vmatprep.subr.bf16.mxu0 0
      %599 = vmatpush1.bf16.xpose.msra.mxu0 0
      %600 = vmatprep.subr.bf16.mxu0 0
      %601 = vmatpush1.bf16.xpose.msra.mxu0 0
      %602 = vmatprep.subr.bf16.mxu0 0
      %603 = vmatpush1.bf16.xpose.msra.mxu0 0
      %604 = vmatprep.subr.bf16.mxu0 0
      %605 = vmatpush1.bf16.xpose.msra.mxu0 0
      %606 = vmatprep.subr.bf16.mxu0 0
      %607 = vmatpush1.bf16.xpose.msra.mxu0 0
      %608 = vmatprep.mubr.bf16.mxu0 0
      %609 = vmatmul.mubr.bf16.gmra.mrb[0].mxu0 %v571
      %v610 = vpop.f32.mrb[0].mxu0
      %v611 = vadd.f32 %v425, %v610
      %v612 = vpop.f32.mrb[0].mxu0
      %v613 = vpop.f32.mrb[0].mxu0
      %v614 = vpop.f32.mrb[0].mxu0
      %615 = vdwg.mxu0
      %617 = vrot.lane.b32.xlu0 %v459, 96
      %v618 = vpop.permute.xlu0 %617
      %v620 = vsel %vm471, %v459, 0
      %v623 = vsel %vm471, %v618, 0
      %625 = vmatprep.subr.bf16.mxu0 0
      %626 = vmatpush1.bf16.xpose.msra.mxu0 %v623
      %627 = vmatprep.subr.bf16.mxu0 0
      %628 = vmatpush1.bf16.xpose.msra.mxu0 0
      %629 = vmatprep.subr.bf16.mxu0 0
      %630 = vmatpush1.bf16.xpose.msra.mxu0 0
      %631 = vmatprep.subr.bf16.mxu0 0
      %632 = vmatpush1.bf16.xpose.msra.mxu0 0
      %633 = vmatprep.subr.bf16.mxu0 0
      %634 = vmatpush1.bf16.xpose.msra.mxu0 0
      %635 = vmatprep.subr.bf16.mxu0 0
      %636 = vmatpush1.bf16.xpose.msra.mxu0 0
      %637 = vmatprep.subr.bf16.mxu0 0
      %638 = vmatpush1.bf16.xpose.msra.mxu0 0
      %639 = vmatprep.subr.bf16.mxu0 0
      %640 = vmatpush1.bf16.xpose.msra.mxu0 0
      %641 = vmatprep.subr.bf16.mxu0 0
      %642 = vmatpush1.bf16.xpose.msra.mxu0 0
      %643 = vmatprep.subr.bf16.mxu0 0
      %644 = vmatpush1.bf16.xpose.msra.mxu0 0
      %645 = vmatprep.subr.bf16.mxu0 0
      %646 = vmatpush1.bf16.xpose.msra.mxu0 0
      %647 = vmatprep.subr.bf16.mxu0 0
      %648 = vmatpush1.bf16.xpose.msra.mxu0 0
      %649 = vmatprep.subr.bf16.mxu0 0
      %650 = vmatpush1.bf16.xpose.msra.mxu0 0
      %651 = vmatprep.subr.bf16.mxu0 0
      %652 = vmatpush1.bf16.xpose.msra.mxu0 0
      %653 = vmatprep.subr.bf16.mxu0 0
      %654 = vmatpush1.bf16.xpose.msra.mxu0 0
      %655 = vmatprep.subr.bf16.mxu0 0
      %656 = vmatpush1.bf16.xpose.msra.mxu0 0
      %657 = vmatprep.mubr.bf16.mxu0 0
      %658 = vmatmul.mubr.bf16.gmra.mrb[0].mxu0 %v620
      %v659 = vpop.f32.mrb[0].mxu0
      %v660 = vadd.f32 %v425, %v659
      %v661 = vpop.f32.mrb[0].mxu0
      %v662 = vpop.f32.mrb[0].mxu0
      %v663 = vpop.f32.mrb[0].mxu0
      %664 = vdwg.mxu0
      %666 = vrot.lane.b32.xlu0 %v460, 96
      %v667 = vpop.permute.xlu0 %666
      %v669 = vsel %vm471, %v460, 0
      %v672 = vsel %vm471, %v667, 0
      %674 = vmatprep.subr.bf16.mxu0 0
      %675 = vmatpush1.bf16.xpose.msra.mxu0 %v672
      %676 = vmatprep.subr.bf16.mxu0 0
      %677 = vmatpush1.bf16.xpose.msra.mxu0 0
      %678 = vmatprep.subr.bf16.mxu0 0
      %679 = vmatpush1.bf16.xpose.msra.mxu0 0
      %680 = vmatprep.subr.bf16.mxu0 0
      %681 = vmatpush1.bf16.xpose.msra.mxu0 0
      %682 = vmatprep.subr.bf16.mxu0 0
      %683 = vmatpush1.bf16.xpose.msra.mxu0 0
      %684 = vmatprep.subr.bf16.mxu0 0
      %685 = vmatpush1.bf16.xpose.msra.mxu0 0
      %686 = vmatprep.subr.bf16.mxu0 0
      %687 = vmatpush1.bf16.xpose.msra.mxu0 0
      %688 = vmatprep.subr.bf16.mxu0 0
      %689 = vmatpush1.bf16.xpose.msra.mxu0 0
      %690 = vmatprep.subr.bf16.mxu0 0
      %691 = vmatpush1.bf16.xpose.msra.mxu0 0
      %692 = vmatprep.subr.bf16.mxu0 0
      %693 = vmatpush1.bf16.xpose.msra.mxu0 0
      %694 = vmatprep.subr.bf16.mxu0 0
      %695 = vmatpush1.bf16.xpose.msra.mxu0 0
      %696 = vmatprep.subr.bf16.mxu0 0
      %697 = vmatpush1.bf16.xpose.msra.mxu0 0
      %698 = vmatprep.subr.bf16.mxu0 0
      %699 = vmatpush1.bf16.xpose.msra.mxu0 0
      %700 = vmatprep.subr.bf16.mxu0 0
      %701 = vmatpush1.bf16.xpose.msra.mxu0 0
      %702 = vmatprep.subr.bf16.mxu0 0
      %703 = vmatpush1.bf16.xpose.msra.mxu0 0
      %704 = vmatprep.subr.bf16.mxu0 0
      %705 = vmatpush1.bf16.xpose.msra.mxu0 0
      %706 = vmatprep.mubr.bf16.mxu0 0
      %707 = vmatmul.mubr.bf16.gmra.mrb[0].mxu0 %v669
      %v708 = vpop.f32.mrb[0].mxu0
      %v709 = vadd.f32 %v425, %v708
      %v710 = vpop.f32.mrb[0].mxu0
      %v711 = vpop.f32.mrb[0].mxu0
      %v712 = vpop.f32.mrb[0].mxu0
      %713 = vdwg.mxu0
      %715 = vrot.lane.b32.xlu0 %v461, 96
      %v716 = vpop.permute.xlu0 %715
      %v718 = vsel %vm471, %v461, 0
      %v721 = vsel %vm471, %v716, 0
      %723 = vmatprep.subr.bf16.mxu0 0
      %724 = vmatpush1.bf16.xpose.msra.mxu0 %v721
      %725 = vmatprep.subr.bf16.mxu0 0
      %726 = vmatpush1.bf16.xpose.msra.mxu0 0
      %727 = vmatprep.subr.bf16.mxu0 0
      %728 = vmatpush1.bf16.xpose.msra.mxu0 0
      %729 = vmatprep.subr.bf16.mxu0 0
      %730 = vmatpush1.bf16.xpose.msra.mxu0 0
      %731 = vmatprep.subr.bf16.mxu0 0
      %732 = vmatpush1.bf16.xpose.msra.mxu0 0
      %733 = vmatprep.subr.bf16.mxu0 0
      %734 = vmatpush1.bf16.xpose.msra.mxu0 0
      %735 = vmatprep.subr.bf16.mxu0 0
      %736 = vmatpush1.bf16.xpose.msra.mxu0 0
      %737 = vmatprep.subr.bf16.mxu0 0
      %738 = vmatpush1.bf16.xpose.msra.mxu0 0
      %739 = vmatprep.subr.bf16.mxu0 0
      %740 = vmatpush1.bf16.xpose.msra.mxu0 0
      %741 = vmatprep.subr.bf16.mxu0 0
      %742 = vmatpush1.bf16.xpose.msra.mxu0 0
      %743 = vmatprep.subr.bf16.mxu0 0
      %744 = vmatpush1.bf16.xpose.msra.mxu0 0
      %745 = vmatprep.subr.bf16.mxu0 0
      %746 = vmatpush1.bf16.xpose.msra.mxu0 0
      %747 = vmatprep.subr.bf16.mxu0 0
      %748 = vmatpush1.bf16.xpose.msra.mxu0 0
      %749 = vmatprep.subr.bf16.mxu0 0
      %750 = vmatpush1.bf16.xpose.msra.mxu0 0
      %751 = vmatprep.subr.bf16.mxu0 0
      %752 = vmatpush1.bf16.xpose.msra.mxu0 0
      %753 = vmatprep.subr.bf16.mxu0 0
      %754 = vmatpush1.bf16.xpose.msra.mxu0 0
      %755 = vmatprep.mubr.bf16.mxu0 0
      %756 = vmatmul.mubr.bf16.gmra.mrb[0].mxu0 %v718
      %v757 = vpop.f32.mrb[0].mxu0
      %v758 = vadd.f32 %v425, %v757
      %v759 = vpop.f32.mrb[0].mxu0
      %v760 = vpop.f32.mrb[0].mxu0
      %v761 = vpop.f32.mrb[0].mxu0
      %762 = vdwg.mxu0
      %764 = vrot.lane.b32.xlu0 %v462, 96
      %v765 = vpop.permute.xlu0 %764
      %v767 = vsel %vm471, %v462, 0
      %v770 = vsel %vm471, %v765, 0
      %772 = vmatprep.subr.bf16.mxu0 0
      %773 = vmatpush1.bf16.xpose.msra.mxu0 %v770
      %774 = vmatprep.subr.bf16.mxu0 0
      %775 = vmatpush1.bf16.xpose.msra.mxu0 0
      %776 = vmatprep.subr.bf16.mxu0 0
      %777 = vmatpush1.bf16.xpose.msra.mxu0 0
      %778 = vmatprep.subr.bf16.mxu0 0
      %779 = vmatpush1.bf16.xpose.msra.mxu0 0
      %780 = vmatprep.subr.bf16.mxu0 0
      %781 = vmatpush1.bf16.xpose.msra.mxu0 0
      %782 = vmatprep.subr.bf16.mxu0 0
      %783 = vmatpush1.bf16.xpose.msra.mxu0 0
      %784 = vmatprep.subr.bf16.mxu0 0
      %785 = vmatpush1.bf16.xpose.msra.mxu0 0
      %786 = vmatprep.subr.bf16.mxu0 0
      %787 = vmatpush1.bf16.xpose.msra.mxu0 0
      %788 = vmatprep.subr.bf16.mxu0 0
      %789 = vmatpush1.bf16.xpose.msra.mxu0 0
      %790 = vmatprep.subr.bf16.mxu0 0
      %791 = vmatpush1.bf16.xpose.msra.mxu0 0
      %792 = vmatprep.subr.bf16.mxu0 0
      %793 = vmatpush1.bf16.xpose.msra.mxu0 0
      %794 = vmatprep.subr.bf16.mxu0 0
      %795 = vmatpush1.bf16.xpose.msra.mxu0 0
      %796 = vmatprep.subr.bf16.mxu0 0
      %797 = vmatpush1.bf16.xpose.msra.mxu0 0
      %798 = vmatprep.subr.bf16.mxu0 0
      %799 = vmatpush1.bf16.xpose.msra.mxu0 0
      %800 = vmatprep.subr.bf16.mxu0 0
      %801 = vmatpush1.bf16.xpose.msra.mxu0 0
      %802 = vmatprep.subr.bf16.mxu0 0
      %803 = vmatpush1.bf16.xpose.msra.mxu0 0
      %804 = vmatprep.mubr.bf16.mxu0 0
      %805 = vmatmul.mubr.bf16.gmra.mrb[0].mxu0 %v767
      %v806 = vpop.f32.mrb[0].mxu0
      %v807 = vadd.f32 %v425, %v806
      %v808 = vpop.f32.mrb[0].mxu0
      %v809 = vpop.f32.mrb[0].mxu0
      %v810 = vpop.f32.mrb[0].mxu0
      %811 = vdwg.mxu0
      %813 = vrot.lane.b32.xlu0 %v463, 96
      %v814 = vpop.permute.xlu0 %813
      %v816 = vsel %vm471, %v463, 0
      %v819 = vsel %vm471, %v814, 0
      %821 = vmatprep.subr.bf16.mxu0 0
      %822 = vmatpush1.bf16.xpose.msra.mxu0 %v819
      %823 = vmatprep.subr.bf16.mxu0 0
      %824 = vmatpush1.bf16.xpose.msra.mxu0 0
      %825 = vmatprep.subr.bf16.mxu0 0
      %826 = vmatpush1.bf16.xpose.msra.mxu0 0
      %827 = vmatprep.subr.bf16.mxu0 0
      %828 = vmatpush1.bf16.xpose.msra.mxu0 0
      %829 = vmatprep.subr.bf16.mxu0 0
      %830 = vmatpush1.bf16.xpose.msra.mxu0 0
      %831 = vmatprep.subr.bf16.mxu0 0
      %832 = vmatpush1.bf16.xpose.msra.mxu0 0
      %833 = vmatprep.subr.bf16.mxu0 0
      %834 = vmatpush1.bf16.xpose.msra.mxu0 0
      %835 = vmatprep.subr.bf16.mxu0 0
      %836 = vmatpush1.bf16.xpose.msra.mxu0 0
      %837 = vmatprep.subr.bf16.mxu0 0
      %838 = vmatpush1.bf16.xpose.msra.mxu0 0
      %839 = vmatprep.subr.bf16.mxu0 0
      %840 = vmatpush1.bf16.xpose.msra.mxu0 0
      %841 = vmatprep.subr.bf16.mxu0 0
      %842 = vmatpush1.bf16.xpose.msra.mxu0 0
      %843 = vmatprep.subr.bf16.mxu0 0
      %844 = vmatpush1.bf16.xpose.msra.mxu0 0
      %845 = vmatprep.subr.bf16.mxu0 0
      %846 = vmatpush1.bf16.xpose.msra.mxu0 0
      %847 = vmatprep.subr.bf16.mxu0 0
      %848 = vmatpush1.bf16.xpose.msra.mxu0 0
      %849 = vmatprep.subr.bf16.mxu0 0
      %850 = vmatpush1.bf16.xpose.msra.mxu0 0
      %851 = vmatprep.subr.bf16.mxu0 0
      %852 = vmatpush1.bf16.xpose.msra.mxu0 0
      %853 = vmatprep.mubr.bf16.mxu0 0
      %854 = vmatmul.mubr.bf16.gmra.mrb[0].mxu0 %v816
      %v855 = vpop.f32.mrb[0].mxu0
      %v856 = vadd.f32 %v425, %v855
      %v857 = vpop.f32.mrb[0].mxu0
      %v858 = vpop.f32.mrb[0].mxu0
      %v859 = vpop.f32.mrb[0].mxu0
      %860 = vdwg.mxu0
      %862 = vrot.lane.b32.xlu0 %v464, 96
      %v863 = vpop.permute.xlu0 %862
      %v865 = vsel %vm471, %v464, 0
      %v868 = vsel %vm471, %v863, 0
      %870 = vmatprep.subr.bf16.mxu0 0
      %871 = vmatpush1.bf16.xpose.msra.mxu0 %v868
      %872 = vmatprep.subr.bf16.mxu0 0
      %873 = vmatpush1.bf16.xpose.msra.mxu0 0
      %874 = vmatprep.subr.bf16.mxu0 0
      %875 = vmatpush1.bf16.xpose.msra.mxu0 0
      %876 = vmatprep.subr.bf16.mxu0 0
      %877 = vmatpush1.bf16.xpose.msra.mxu0 0
      %878 = vmatprep.subr.bf16.mxu0 0
      %879 = vmatpush1.bf16.xpose.msra.mxu0 0
      %880 = vmatprep.subr.bf16.mxu0 0
      %881 = vmatpush1.bf16.xpose.msra.mxu0 0
      %882 = vmatprep.subr.bf16.mxu0 0
      %883 = vmatpush1.bf16.xpose.msra.mxu0 0
      %884 = vmatprep.subr.bf16.mxu0 0
      %885 = vmatpush1.bf16.xpose.msra.mxu0 0
      %886 = vmatprep.subr.bf16.mxu0 0
      %887 = vmatpush1.bf16.xpose.msra.mxu0 0
      %888 = vmatprep.subr.bf16.mxu0 0
      %889 = vmatpush1.bf16.xpose.msra.mxu0 0
      %890 = vmatprep.subr.bf16.mxu0 0
      %891 = vmatpush1.bf16.xpose.msra.mxu0 0
      %892 = vmatprep.subr.bf16.mxu0 0
      %893 = vmatpush1.bf16.xpose.msra.mxu0 0
      %894 = vmatprep.subr.bf16.mxu0 0
      %895 = vmatpush1.bf16.xpose.msra.mxu0 0
      %896 = vmatprep.subr.bf16.mxu0 0
      %897 = vmatpush1.bf16.xpose.msra.mxu0 0
      %898 = vmatprep.subr.bf16.mxu0 0
      %899 = vmatpush1.bf16.xpose.msra.mxu0 0
      %900 = vmatprep.subr.bf16.mxu0 0
      %901 = vmatpush1.bf16.xpose.msra.mxu0 0
      %902 = vmatprep.mubr.bf16.mxu0 0
      %903 = vmatmul.mubr.bf16.gmra.mrb[0].mxu0 %v865
      %v904 = vpop.f32.mrb[0].mxu0
      %v905 = vadd.f32 %v425, %v904
      %v906 = vpop.f32.mrb[0].mxu0
      %v907 = vpop.f32.mrb[0].mxu0
      %v908 = vpop.f32.mrb[0].mxu0
      %909 = vdwg.mxu0
      %911 = vrot.lane.b32.xlu0 %v465, 96
      %v912 = vpop.permute.xlu0 %911
      %v914 = vsel %vm471, %v465, 0
      %v917 = vsel %vm471, %v912, 0
      %919 = vmatprep.subr.bf16.mxu0 0
      %920 = vmatpush1.bf16.xpose.msra.mxu0 %v917
      %921 = vmatprep.subr.bf16.mxu0 0
      %922 = vmatpush1.bf16.xpose.msra.mxu0 0
      %923 = vmatprep.subr.bf16.mxu0 0
      %924 = vmatpush1.bf16.xpose.msra.mxu0 0
      %925 = vmatprep.subr.bf16.mxu0 0
      %926 = vmatpush1.bf16.xpose.msra.mxu0 0
      %927 = vmatprep.subr.bf16.mxu0 0
      %928 = vmatpush1.bf16.xpose.msra.mxu0 0
      %929 = vmatprep.subr.bf16.mxu0 0
      %930 = vmatpush1.bf16.xpose.msra.mxu0 0
      %931 = vmatprep.subr.bf16.mxu0 0
      %932 = vmatpush1.bf16.xpose.msra.mxu0 0
      %933 = vmatprep.subr.bf16.mxu0 0
      %934 = vmatpush1.bf16.xpose.msra.mxu0 0
      %935 = vmatprep.subr.bf16.mxu0 0
      %936 = vmatpush1.bf16.xpose.msra.mxu0 0
      %937 = vmatprep.subr.bf16.mxu0 0
      %938 = vmatpush1.bf16.xpose.msra.mxu0 0
      %939 = vmatprep.subr.bf16.mxu0 0
      %940 = vmatpush1.bf16.xpose.msra.mxu0 0
      %941 = vmatprep.subr.bf16.mxu0 0
      %942 = vmatpush1.bf16.xpose.msra.mxu0 0
      %943 = vmatprep.subr.bf16.mxu0 0
      %944 = vmatpush1.bf16.xpose.msra.mxu0 0
      %945 = vmatprep.subr.bf16.mxu0 0
      %946 = vmatpush1.bf16.xpose.msra.mxu0 0
      %947 = vmatprep.subr.bf16.mxu0 0
      %948 = vmatpush1.bf16.xpose.msra.mxu0 0
      %949 = vmatprep.subr.bf16.mxu0 0
      %950 = vmatpush1.bf16.xpose.msra.mxu0 0
      %951 = vmatprep.mubr.bf16.mxu0 0
      %952 = vmatmul.mubr.bf16.gmra.mrb[0].mxu0 %v914
      %v953 = vpop.f32.mrb[0].mxu0
      %v954 = vadd.f32 %v425, %v953
      %v955 = vpop.f32.mrb[0].mxu0
      %v956 = vpop.f32.mrb[0].mxu0
      %v957 = vpop.f32.mrb[0].mxu0
      %958 = vdwg.mxu0
      %960 = vrot.lane.b32.xlu0 %v466, 96
      %v961 = vpop.permute.xlu0 %960
      %v963 = vsel %vm471, %v466, 0
      %v966 = vsel %vm471, %v961, 0
      %968 = vmatprep.subr.bf16.mxu0 0
      %969 = vmatpush1.bf16.xpose.msra.mxu0 %v966
      %970 = vmatprep.subr.bf16.mxu0 0
      %971 = vmatpush1.bf16.xpose.msra.mxu0 0
      %972 = vmatprep.subr.bf16.mxu0 0
      %973 = vmatpush1.bf16.xpose.msra.mxu0 0
      %974 = vmatprep.subr.bf16.mxu0 0
      %975 = vmatpush1.bf16.xpose.msra.mxu0 0
      %976 = vmatprep.subr.bf16.mxu0 0
      %977 = vmatpush1.bf16.xpose.msra.mxu0 0
      %978 = vmatprep.subr.bf16.mxu0 0
      %979 = vmatpush1.bf16.xpose.msra.mxu0 0
      %980 = vmatprep.subr.bf16.mxu0 0
      %981 = vmatpush1.bf16.xpose.msra.mxu0 0
      %982 = vmatprep.subr.bf16.mxu0 0
      %983 = vmatpush1.bf16.xpose.msra.mxu0 0
      %984 = vmatprep.subr.bf16.mxu0 0
      %985 = vmatpush1.bf16.xpose.msra.mxu0 0
      %986 = vmatprep.subr.bf16.mxu0 0
      %987 = vmatpush1.bf16.xpose.msra.mxu0 0
      %988 = vmatprep.subr.bf16.mxu0 0
      %989 = vmatpush1.bf16.xpose.msra.mxu0 0
      %990 = vmatprep.subr.bf16.mxu0 0
      %991 = vmatpush1.bf16.xpose.msra.mxu0 0
      %992 = vmatprep.subr.bf16.mxu0 0
      %993 = vmatpush1.bf16.xpose.msra.mxu0 0
      %994 = vmatprep.subr.bf16.mxu0 0
      %995 = vmatpush1.bf16.xpose.msra.mxu0 0
      %996 = vmatprep.subr.bf16.mxu0 0
      %997 = vmatpush1.bf16.xpose.msra.mxu0 0
      %998 = vmatprep.subr.bf16.mxu0 0
      %999 = vmatpush1.bf16.xpose.msra.mxu0 0
      %1000 = vmatprep.mubr.bf16.mxu0 0
      %1001 = vmatmul.mubr.bf16.gmra.mrb[0].mxu0 %v963
      %v1002 = vpop.f32.mrb[0].mxu0
      %v1003 = vadd.f32 %v425, %v1002
      %v1004 = vpop.f32.mrb[0].mxu0
      %v1005 = vpop.f32.mrb[0].mxu0
      %v1006 = vpop.f32.mrb[0].mxu0
      %1007 = vdwg.mxu0
      %1009 = vrot.lane.b32.xlu0 %v467, 96
      %v1010 = vpop.permute.xlu0 %1009
      %v1012 = vsel %vm471, %v467, 0
      %v1015 = vsel %vm471, %v1010, 0
      %1017 = vmatprep.subr.bf16.mxu0 0
      %1018 = vmatpush1.bf16.xpose.msra.mxu0 %v1015
      %1019 = vmatprep.subr.bf16.mxu0 0
      %1020 = vmatpush1.bf16.xpose.msra.mxu0 0
      %1021 = vmatprep.subr.bf16.mxu0 0
      %1022 = vmatpush1.bf16.xpose.msra.mxu0 0
      %1023 = vmatprep.subr.bf16.mxu0 0
      %1024 = vmatpush1.bf16.xpose.msra.mxu0 0
      %1025 = vmatprep.subr.bf16.mxu0 0
      %1026 = vmatpush1.bf16.xpose.msra.mxu0 0
      %1027 = vmatprep.subr.bf16.mxu0 0
      %1028 = vmatpush1.bf16.xpose.msra.mxu0 0
      %1029 = vmatprep.subr.bf16.mxu0 0
      %1030 = vmatpush1.bf16.xpose.msra.mxu0 0
      %1031 = vmatprep.subr.bf16.mxu0 0
      %1032 = vmatpush1.bf16.xpose.msra.mxu0 0
      %1033 = vmatprep.subr.bf16.mxu0 0
      %1034 = vmatpush1.bf16.xpose.msra.mxu0 0
      %1035 = vmatprep.subr.bf16.mxu0 0
      %1036 = vmatpush1.bf16.xpose.msra.mxu0 0
      %1037 = vmatprep.subr.bf16.mxu0 0
      %1038 = vmatpush1.bf16.xpose.msra.mxu0 0
      %1039 = vmatprep.subr.bf16.mxu0 0
      %1040 = vmatpush1.bf16.xpose.msra.mxu0 0
      %1041 = vmatprep.subr.bf16.mxu0 0
      %1042 = vmatpush1.bf16.xpose.msra.mxu0 0
      %1043 = vmatprep.subr.bf16.mxu0 0
      %1044 = vmatpush1.bf16.xpose.msra.mxu0 0
      %1045 = vmatprep.subr.bf16.mxu0 0
      %1046 = vmatpush1.bf16.xpose.msra.mxu0 0
      %1047 = vmatprep.subr.bf16.mxu0 0
      %1048 = vmatpush1.bf16.xpose.msra.mxu0 0
      %1049 = vmatprep.mubr.bf16.mxu0 0
      %1050 = vmatmul.mubr.bf16.gmra.mrb[0].mxu0 %v1012
      %v1051 = vpop.f32.mrb[0].mxu0
      %v1052 = vadd.f32 %v425, %v1051
      %v1053 = vpop.f32.mrb[0].mxu0
      %v1054 = vpop.f32.mrb[0].mxu0
      %v1055 = vpop.f32.mrb[0].mxu0
      %1056 = vdwg.mxu0
      %v1057 = vsel %vm471, %v513, -inf
      %1058 = vmax.xlane.f32.xlu0 %v1057
      %v1059 = vpop.xlane.xlu0 %1058
      %v1060 = vsel %vm471, %v562, -inf
      %1061 = vmax.xlane.f32.xlu0 %v1060
      %v1062 = vpop.xlane.xlu0 %1061
      %v1063 = vsel %vm471, %v611, -inf
      %1064 = vmax.xlane.f32.xlu0 %v1063
      %v1065 = vpop.xlane.xlu0 %1064
      %v1066 = vsel %vm471, %v660, -inf
      %1067 = vmax.xlane.f32.xlu0 %v1066
      %v1068 = vpop.xlane.xlu0 %1067
      %v1069 = vsel %vm471, %v709, -inf
      %1070 = vmax.xlane.f32.xlu0 %v1069
      %v1071 = vpop.xlane.xlu0 %1070
      %v1072 = vsel %vm471, %v758, -inf
      %1073 = vmax.xlane.f32.xlu0 %v1072
      %v1074 = vpop.xlane.xlu0 %1073
      %v1075 = vsel %vm471, %v807, -inf
      %1076 = vmax.xlane.f32.xlu0 %v1075
      %v1077 = vpop.xlane.xlu0 %1076
      %v1078 = vsel %vm471, %v856, -inf
      %1079 = vmax.xlane.f32.xlu0 %v1078
      %v1080 = vpop.xlane.xlu0 %1079
      %v1081 = vsel %vm471, %v905, -inf
      %1082 = vmax.xlane.f32.xlu0 %v1081
      %v1083 = vpop.xlane.xlu0 %1082
      %v1084 = vsel %vm471, %v954, -inf
      %1085 = vmax.xlane.f32.xlu0 %v1084
      %v1086 = vpop.xlane.xlu0 %1085
      %v1087 = vsel %vm471, %v1003, -inf
      %1088 = vmax.xlane.f32.xlu0 %v1087
      %v1089 = vpop.xlane.xlu0 %1088
      %v1090 = vsel %vm471, %v1052, -inf
      %1091 = vmax.xlane.f32.xlu0 %v1090
      %v1092 = vpop.xlane.xlu0 %1091
      %v1093 = vsub.f32 %v513, %v1059
      %v1094 = vsub.f32 %v562, %v1062
      %v1095 = vsub.f32 %v611, %v1065
      %v1096 = vsub.f32 %v660, %v1068
      %v1097 = vsub.f32 %v709, %v1071
      %v1098 = vsub.f32 %v758, %v1074
      %v1099 = vsub.f32 %v807, %v1077
      %v1100 = vsub.f32 %v856, %v1080
      %v1101 = vsub.f32 %v905, %v1083
      %v1102 = vsub.f32 %v954, %v1086
      %v1103 = vsub.f32 %v1003, %v1089
      %v1104 = vsub.f32 %v1052, %v1092
      %v1105 = vmul.f32 %v1093, 1.442695
      %v1106 = vpow.pop %v1105
      %v1107 = vmul.f32 %v1094, 1.442695
      %v1108 = vpow.pop %v1107
      %v1109 = vmul.f32 %v1095, 1.442695
      %v1110 = vpow.pop %v1109
      %v1111 = vmul.f32 %v1096, 1.442695
      %v1112 = vpow.pop %v1111
      %v1113 = vmul.f32 %v1097, 1.442695
      %v1114 = vpow.pop %v1113
      %v1115 = vmul.f32 %v1098, 1.442695
      %v1116 = vpow.pop %v1115
      %v1117 = vmul.f32 %v1099, 1.442695
      %v1118 = vpow.pop %v1117
      %v1119 = vmul.f32 %v1100, 1.442695
      %v1120 = vpow.pop %v1119
      %v1121 = vmul.f32 %v1101, 1.442695
      %v1122 = vpow.pop %v1121
      %v1123 = vmul.f32 %v1102, 1.442695
      %v1124 = vpow.pop %v1123
      %v1125 = vmul.f32 %v1103, 1.442695
      %v1126 = vpow.pop %v1125
      %v1127 = vmul.f32 %v1104, 1.442695
      %v1128 = vpow.pop %v1127
      %v1129 = vsel %vm471, %v1106, 0.0
      %1130 = vadd.xlane.f32.xlu0 %v1129
      %v1131 = vpop.xlane.xlu0 %1130
      %v1132 = vsel %vm471, %v1108, 0.0
      %1133 = vadd.xlane.f32.xlu0 %v1132
      %v1134 = vpop.xlane.xlu0 %1133
      %v1135 = vsel %vm471, %v1110, 0.0
      %1136 = vadd.xlane.f32.xlu0 %v1135
      %v1137 = vpop.xlane.xlu0 %1136
      %v1138 = vsel %vm471, %v1112, 0.0
      %1139 = vadd.xlane.f32.xlu0 %v1138
      %v1140 = vpop.xlane.xlu0 %1139
      %v1141 = vsel %vm471, %v1114, 0.0
      %1142 = vadd.xlane.f32.xlu0 %v1141
      %v1143 = vpop.xlane.xlu0 %1142
      %v1144 = vsel %vm471, %v1116, 0.0
      %1145 = vadd.xlane.f32.xlu0 %v1144
      %v1146 = vpop.xlane.xlu0 %1145
      %v1147 = vsel %vm471, %v1118, 0.0
      %1148 = vadd.xlane.f32.xlu0 %v1147
      %v1149 = vpop.xlane.xlu0 %1148
      %v1150 = vsel %vm471, %v1120, 0.0
      %1151 = vadd.xlane.f32.xlu0 %v1150
      %v1152 = vpop.xlane.xlu0 %1151
      %v1153 = vsel %vm471, %v1122, 0.0
      %1154 = vadd.xlane.f32.xlu0 %v1153
      %v1155 = vpop.xlane.xlu0 %1154
      %v1156 = vsel %vm471, %v1124, 0.0
      %1157 = vadd.xlane.f32.xlu0 %v1156
      %v1158 = vpop.xlane.xlu0 %1157
      %v1159 = vsel %vm471, %v1126, 0.0
      %1160 = vadd.xlane.f32.xlu0 %v1159
      %v1161 = vpop.xlane.xlu0 %1160
      %v1162 = vsel %vm471, %v1128, 0.0
      %1163 = vadd.xlane.f32.xlu0 %v1162
      %v1164 = vpop.xlane.xlu0 %1163
      %v1165 = vrcp.pop %v1131
      %v1166 = vrcp.pop %v1134
      %v1167 = vrcp.pop %v1137
      %v1168 = vrcp.pop %v1140
      %v1169 = vrcp.pop %v1143
      %v1170 = vrcp.pop %v1146
      %v1171 = vrcp.pop %v1149
      %v1172 = vrcp.pop %v1152
      %v1173 = vrcp.pop %v1155
      %v1174 = vrcp.pop %v1158
      %v1175 = vrcp.pop %v1161
      %v1176 = vrcp.pop %v1164
      %v1177 = vmul.f32 %v1106, %v1165
      %v1178 = vmul.f32 %v1108, %v1166
      %v1179 = vmul.f32 %v1110, %v1167
      %v1180 = vmul.f32 %v1112, %v1168
      %v1181 = vmul.f32 %v1114, %v1169
      %v1182 = vmul.f32 %v1116, %v1170
      %v1183 = vmul.f32 %v1118, %v1171
      %v1184 = vmul.f32 %v1120, %v1172
      %v1185 = vmul.f32 %v1122, %v1173
      %v1186 = vmul.f32 %v1124, %v1174
      %v1187 = vmul.f32 %v1126, %v1175
      %v1188 = vmul.f32 %v1128, %v1176
      %v1189 = vpack.c.bf16 %v1177, %v1177
      %v1190 = vpack.c.bf16 %v1178, %v1178
      %v1191 = vpack.c.bf16 %v1179, %v1179
      %v1192 = vpack.c.bf16 %v1180, %v1180
      %v1193 = vpack.c.bf16 %v1181, %v1181
      %v1194 = vpack.c.bf16 %v1182, %v1182
      %v1195 = vpack.c.bf16 %v1183, %v1183
      %v1196 = vpack.c.bf16 %v1184, %v1184
      %v1197 = vpack.c.bf16 %v1185, %v1185
      %v1198 = vpack.c.bf16 %v1186, %v1186
      %v1199 = vpack.c.bf16 %v1187, %v1187
      %v1200 = vpack.c.bf16 %v1188, %v1188
      %1201 = vrot.lane.b32.xlu0 %v456, 64
      %v1202 = vpop.permute.xlu0 %1201
      %v1204 = vsel %vm471, %v1189, 0
      %vm1206 = vcmask 1043456
      %v1208 = vsel %vm1206, %v1202, 0
      %1210 = vmatprep.subr.bf16.mxu0 0
      %1211 = vmatpush1.bf16.msra.mxu0 %v1208
      %1212 = vmatprep.subr.bf16.mxu0 0
      %1213 = vmatpush1.bf16.msra.mxu0 0
      %1214 = vmatprep.subr.bf16.mxu0 0
      %1215 = vmatpush1.bf16.msra.mxu0 0
      %1216 = vmatprep.subr.bf16.mxu0 0
      %1217 = vmatpush1.bf16.msra.mxu0 0
      %1218 = vmatprep.subr.bf16.mxu0 0
      %1219 = vmatpush1.bf16.msra.mxu0 0
      %1220 = vmatprep.subr.bf16.mxu0 0
      %1221 = vmatpush1.bf16.msra.mxu0 0
      %1222 = vmatprep.subr.bf16.mxu0 0
      %1223 = vmatpush1.bf16.msra.mxu0 0
      %1224 = vmatprep.subr.bf16.mxu0 0
      %1225 = vmatpush1.bf16.msra.mxu0 0
      %1226 = vmatprep.subr.bf16.mxu0 0
      %1227 = vmatpush1.bf16.msra.mxu0 0
      %1228 = vmatprep.subr.bf16.mxu0 0
      %1229 = vmatpush1.bf16.msra.mxu0 0
      %1230 = vmatprep.subr.bf16.mxu0 0
      %1231 = vmatpush1.bf16.msra.mxu0 0
      %1232 = vmatprep.subr.bf16.mxu0 0
      %1233 = vmatpush1.bf16.msra.mxu0 0
      %1234 = vmatprep.subr.bf16.mxu0 0
      %1235 = vmatpush1.bf16.msra.mxu0 0
      %1236 = vmatprep.subr.bf16.mxu0 0
      %1237 = vmatpush1.bf16.msra.mxu0 0
      %1238 = vmatprep.subr.bf16.mxu0 0
      %1239 = vmatpush1.bf16.msra.mxu0 0
      %1240 = vmatprep.subr.bf16.mxu0 0
      %1241 = vmatpush1.bf16.msra.mxu0 0
      %1242 = vmatprep.mubr.bf16.mxu0 0
      %1243 = vmatmul.mubr.bf16.gmra.mrb[0].mxu0 %v1204
      %v1244 = vpop.f32.mrb[0].mxu0
      %v1245 = vadd.f32 0.0, %v1244
      %v1246 = vpop.f32.mrb[0].mxu0
      %v1247 = vpop.f32.mrb[0].mxu0
      %v1248 = vpop.f32.mrb[0].mxu0
      %1249 = vdwg.mxu0
      %1250 = vrot.lane.b32.xlu0 %v457, 64
      %v1251 = vpop.permute.xlu0 %1250
      %v1253 = vsel %vm471, %v1190, 0
      %v1256 = vsel %vm1206, %v1251, 0
      %1258 = vmatprep.subr.bf16.mxu0 0
      %1259 = vmatpush1.bf16.msra.mxu0 %v1256
      %1260 = vmatprep.subr.bf16.mxu0 0
      %1261 = vmatpush1.bf16.msra.mxu0 0
      %1262 = vmatprep.subr.bf16.mxu0 0
      %1263 = vmatpush1.bf16.msra.mxu0 0
      %1264 = vmatprep.subr.bf16.mxu0 0
      %1265 = vmatpush1.bf16.msra.mxu0 0
      %1266 = vmatprep.subr.bf16.mxu0 0
      %1267 = vmatpush1.bf16.msra.mxu0 0
      %1268 = vmatprep.subr.bf16.mxu0 0
      %1269 = vmatpush1.bf16.msra.mxu0 0
      %1270 = vmatprep.subr.bf16.mxu0 0
      %1271 = vmatpush1.bf16.msra.mxu0 0
      %1272 = vmatprep.subr.bf16.mxu0 0
      %1273 = vmatpush1.bf16.msra.mxu0 0
      %1274 = vmatprep.subr.bf16.mxu0 0
      %1275 = vmatpush1.bf16.msra.mxu0 0
      %1276 = vmatprep.subr.bf16.mxu0 0
      %1277 = vmatpush1.bf16.msra.mxu0 0
      %1278 = vmatprep.subr.bf16.mxu0 0
      %1279 = vmatpush1.bf16.msra.mxu0 0
      %1280 = vmatprep.subr.bf16.mxu0 0
      %1281 = vmatpush1.bf16.msra.mxu0 0
      %1282 = vmatprep.subr.bf16.mxu0 0
      %1283 = vmatpush1.bf16.msra.mxu0 0
      %1284 = vmatprep.subr.bf16.mxu0 0
      %1285 = vmatpush1.bf16.msra.mxu0 0
      %1286 = vmatprep.subr.bf16.mxu0 0
      %1287 = vmatpush1.bf16.msra.mxu0 0
      %1288 = vmatprep.subr.bf16.mxu0 0
      %1289 = vmatpush1.bf16.msra.mxu0 0
      %1290 = vmatprep.mubr.bf16.mxu0 0
      %1291 = vmatmul.mubr.bf16.gmra.mrb[0].mxu0 %v1253
      %v1292 = vpop.f32.mrb[0].mxu0
      %v1293 = vadd.f32 0.0, %v1292
      %v1294 = vpop.f32.mrb[0].mxu0
      %v1295 = vpop.f32.mrb[0].mxu0
      %v1296 = vpop.f32.mrb[0].mxu0
      %1297 = vdwg.mxu0
      %1298 = vrot.lane.b32.xlu0 %v458, 64
      %v1299 = vpop.permute.xlu0 %1298
      %v1301 = vsel %vm471, %v1191, 0
      %v1304 = vsel %vm1206, %v1299, 0
      %1306 = vmatprep.subr.bf16.mxu0 0
      %1307 = vmatpush1.bf16.msra.mxu0 %v1304
      %1308 = vmatprep.subr.bf16.mxu0 0
      %1309 = vmatpush1.bf16.msra.mxu0 0
      %1310 = vmatprep.subr.bf16.mxu0 0
      %1311 = vmatpush1.bf16.msra.mxu0 0
      %1312 = vmatprep.subr.bf16.mxu0 0
      %1313 = vmatpush1.bf16.msra.mxu0 0
      %1314 = vmatprep.subr.bf16.mxu0 0
      %1315 = vmatpush1.bf16.msra.mxu0 0
      %1316 = vmatprep.subr.bf16.mxu0 0
      %1317 = vmatpush1.bf16.msra.mxu0 0
      %1318 = vmatprep.subr.bf16.mxu0 0
      %1319 = vmatpush1.bf16.msra.mxu0 0
      %1320 = vmatprep.subr.bf16.mxu0 0
      %1321 = vmatpush1.bf16.msra.mxu0 0
      %1322 = vmatprep.subr.bf16.mxu0 0
      %1323 = vmatpush1.bf16.msra.mxu0 0
      %1324 = vmatprep.subr.bf16.mxu0 0
      %1325 = vmatpush1.bf16.msra.mxu0 0
      %1326 = vmatprep.subr.bf16.mxu0 0
      %1327 = vmatpush1.bf16.msra.mxu0 0
      %1328 = vmatprep.subr.bf16.mxu0 0
      %1329 = vmatpush1.bf16.msra.mxu0 0
      %1330 = vmatprep.subr.bf16.mxu0 0
      %1331 = vmatpush1.bf16.msra.mxu0 0
      %1332 = vmatprep.subr.bf16.mxu0 0
      %1333 = vmatpush1.bf16.msra.mxu0 0
      %1334 = vmatprep.subr.bf16.mxu0 0
      %1335 = vmatpush1.bf16.msra.mxu0 0
      %1336 = vmatprep.subr.bf16.mxu0 0
      %1337 = vmatpush1.bf16.msra.mxu0 0
      %1338 = vmatprep.mubr.bf16.mxu0 0
      %1339 = vmatmul.mubr.bf16.gmra.mrb[0].mxu0 %v1301
      %v1340 = vpop.f32.mrb[0].mxu0
      %v1341 = vadd.f32 0.0, %v1340
      %v1342 = vpop.f32.mrb[0].mxu0
      %v1343 = vpop.f32.mrb[0].mxu0
      %v1344 = vpop.f32.mrb[0].mxu0
      %1345 = vdwg.mxu0
      %1346 = vrot.lane.b32.xlu0 %v459, 64
      %v1347 = vpop.permute.xlu0 %1346
      %v1349 = vsel %vm471, %v1192, 0
      %v1352 = vsel %vm1206, %v1347, 0
      %1354 = vmatprep.subr.bf16.mxu0 0
      %1355 = vmatpush1.bf16.msra.mxu0 %v1352
      %1356 = vmatprep.subr.bf16.mxu0 0
      %1357 = vmatpush1.bf16.msra.mxu0 0
      %1358 = vmatprep.subr.bf16.mxu0 0
      %1359 = vmatpush1.bf16.msra.mxu0 0
      %1360 = vmatprep.subr.bf16.mxu0 0
      %1361 = vmatpush1.bf16.msra.mxu0 0
      %1362 = vmatprep.subr.bf16.mxu0 0
      %1363 = vmatpush1.bf16.msra.mxu0 0
      %1364 = vmatprep.subr.bf16.mxu0 0
      %1365 = vmatpush1.bf16.msra.mxu0 0
      %1366 = vmatprep.subr.bf16.mxu0 0
      %1367 = vmatpush1.bf16.msra.mxu0 0
      %1368 = vmatprep.subr.bf16.mxu0 0
      %1369 = vmatpush1.bf16.msra.mxu0 0
      %1370 = vmatprep.subr.bf16.mxu0 0
      %1371 = vmatpush1.bf16.msra.mxu0 0
      %1372 = vmatprep.subr.bf16.mxu0 0
      %1373 = vmatpush1.bf16.msra.mxu0 0
      %1374 = vmatprep.subr.bf16.mxu0 0
      %1375 = vmatpush1.bf16.msra.mxu0 0
      %1376 = vmatprep.subr.bf16.mxu0 0
      %1377 = vmatpush1.bf16.msra.mxu0 0
      %1378 = vmatprep.subr.bf16.mxu0 0
      %1379 = vmatpush1.bf16.msra.mxu0 0
      %1380 = vmatprep.subr.bf16.mxu0 0
      %1381 = vmatpush1.bf16.msra.mxu0 0
      %1382 = vmatprep.subr.bf16.mxu0 0
      %1383 = vmatpush1.bf16.msra.mxu0 0
      %1384 = vmatprep.subr.bf16.mxu0 0
      %1385 = vmatpush1.bf16.msra.mxu0 0
      %1386 = vmatprep.mubr.bf16.mxu0 0
      %1387 = vmatmul.mubr.bf16.gmra.mrb[0].mxu0 %v1349
      %v1388 = vpop.f32.mrb[0].mxu0
      %v1389 = vadd.f32 0.0, %v1388
      %v1390 = vpop.f32.mrb[0].mxu0
      %v1391 = vpop.f32.mrb[0].mxu0
      %v1392 = vpop.f32.mrb[0].mxu0
      %1393 = vdwg.mxu0
      %1394 = vrot.lane.b32.xlu0 %v460, 64
      %v1395 = vpop.permute.xlu0 %1394
      %v1397 = vsel %vm471, %v1193, 0
      %v1400 = vsel %vm1206, %v1395, 0
      %1402 = vmatprep.subr.bf16.mxu0 0
      %1403 = vmatpush1.bf16.msra.mxu0 %v1400
      %1404 = vmatprep.subr.bf16.mxu0 0
      %1405 = vmatpush1.bf16.msra.mxu0 0
      %1406 = vmatprep.subr.bf16.mxu0 0
      %1407 = vmatpush1.bf16.msra.mxu0 0
      %1408 = vmatprep.subr.bf16.mxu0 0
      %1409 = vmatpush1.bf16.msra.mxu0 0
      %1410 = vmatprep.subr.bf16.mxu0 0
      %1411 = vmatpush1.bf16.msra.mxu0 0
      %1412 = vmatprep.subr.bf16.mxu0 0
      %1413 = vmatpush1.bf16.msra.mxu0 0
      %1414 = vmatprep.subr.bf16.mxu0 0
      %1415 = vmatpush1.bf16.msra.mxu0 0
      %1416 = vmatprep.subr.bf16.mxu0 0
      %1417 = vmatpush1.bf16.msra.mxu0 0
      %1418 = vmatprep.subr.bf16.mxu0 0
      %1419 = vmatpush1.bf16.msra.mxu0 0
      %1420 = vmatprep.subr.bf16.mxu0 0
      %1421 = vmatpush1.bf16.msra.mxu0 0
      %1422 = vmatprep.subr.bf16.mxu0 0
      %1423 = vmatpush1.bf16.msra.mxu0 0
      %1424 = vmatprep.subr.bf16.mxu0 0
      %1425 = vmatpush1.bf16.msra.mxu0 0
      %1426 = vmatprep.subr.bf16.mxu0 0
      %1427 = vmatpush1.bf16.msra.mxu0 0
      %1428 = vmatprep.subr.bf16.mxu0 0
      %1429 = vmatpush1.bf16.msra.mxu0 0
      %1430 = vmatprep.subr.bf16.mxu0 0
      %1431 = vmatpush1.bf16.msra.mxu0 0
      %1432 = vmatprep.subr.bf16.mxu0 0
      %1433 = vmatpush1.bf16.msra.mxu0 0
      %1434 = vmatprep.mubr.bf16.mxu0 0
      %1435 = vmatmul.mubr.bf16.gmra.mrb[0].mxu0 %v1397
      %v1436 = vpop.f32.mrb[0].mxu0
      %v1437 = vadd.f32 0.0, %v1436
      %v1438 = vpop.f32.mrb[0].mxu0
      %v1439 = vpop.f32.mrb[0].mxu0
      %v1440 = vpop.f32.mrb[0].mxu0
      %1441 = vdwg.mxu0
      %1442 = vrot.lane.b32.xlu0 %v461, 64
      %v1443 = vpop.permute.xlu0 %1442
      %v1445 = vsel %vm471, %v1194, 0
      %v1448 = vsel %vm1206, %v1443, 0
      %1450 = vmatprep.subr.bf16.mxu0 0
      %1451 = vmatpush1.bf16.msra.mxu0 %v1448
      %1452 = vmatprep.subr.bf16.mxu0 0
      %1453 = vmatpush1.bf16.msra.mxu0 0
      %1454 = vmatprep.subr.bf16.mxu0 0
      %1455 = vmatpush1.bf16.msra.mxu0 0
      %1456 = vmatprep.subr.bf16.mxu0 0
      %1457 = vmatpush1.bf16.msra.mxu0 0
      %1458 = vmatprep.subr.bf16.mxu0 0
      %1459 = vmatpush1.bf16.msra.mxu0 0
      %1460 = vmatprep.subr.bf16.mxu0 0
      %1461 = vmatpush1.bf16.msra.mxu0 0
      %1462 = vmatprep.subr.bf16.mxu0 0
      %1463 = vmatpush1.bf16.msra.mxu0 0
      %1464 = vmatprep.subr.bf16.mxu0 0
      %1465 = vmatpush1.bf16.msra.mxu0 0
      %1466 = vmatprep.subr.bf16.mxu0 0
      %1467 = vmatpush1.bf16.msra.mxu0 0
      %1468 = vmatprep.subr.bf16.mxu0 0
      %1469 = vmatpush1.bf16.msra.mxu0 0
      %1470 = vmatprep.subr.bf16.mxu0 0
      %1471 = vmatpush1.bf16.msra.mxu0 0
      %1472 = vmatprep.subr.bf16.mxu0 0
      %1473 = vmatpush1.bf16.msra.mxu0 0
      %1474 = vmatprep.subr.bf16.mxu0 0
      %1475 = vmatpush1.bf16.msra.mxu0 0
      %1476 = vmatprep.subr.bf16.mxu0 0
      %1477 = vmatpush1.bf16.msra.mxu0 0
      %1478 = vmatprep.subr.bf16.mxu0 0
      %1479 = vmatpush1.bf16.msra.mxu0 0
      %1480 = vmatprep.subr.bf16.mxu0 0
      %1481 = vmatpush1.bf16.msra.mxu0 0
      %1482 = vmatprep.mubr.bf16.mxu0 0
      %1483 = vmatmul.mubr.bf16.gmra.mrb[0].mxu0 %v1445
      %v1484 = vpop.f32.mrb[0].mxu0
      %v1485 = vadd.f32 0.0, %v1484
      %v1486 = vpop.f32.mrb[0].mxu0
      %v1487 = vpop.f32.mrb[0].mxu0
      %v1488 = vpop.f32.mrb[0].mxu0
      %1489 = vdwg.mxu0
      %1490 = vrot.lane.b32.xlu0 %v462, 64
      %v1491 = vpop.permute.xlu0 %1490
      %v1493 = vsel %vm471, %v1195, 0
      %v1496 = vsel %vm1206, %v1491, 0
      %1498 = vmatprep.subr.bf16.mxu0 0
      %1499 = vmatpush1.bf16.msra.mxu0 %v1496
      %1500 = vmatprep.subr.bf16.mxu0 0
      %1501 = vmatpush1.bf16.msra.mxu0 0
      %1502 = vmatprep.subr.bf16.mxu0 0
      %1503 = vmatpush1.bf16.msra.mxu0 0
      %1504 = vmatprep.subr.bf16.mxu0 0
      %1505 = vmatpush1.bf16.msra.mxu0 0
      %1506 = vmatprep.subr.bf16.mxu0 0
      %1507 = vmatpush1.bf16.msra.mxu0 0
      %1508 = vmatprep.subr.bf16.mxu0 0
      %1509 = vmatpush1.bf16.msra.mxu0 0
      %1510 = vmatprep.subr.bf16.mxu0 0
      %1511 = vmatpush1.bf16.msra.mxu0 0
      %1512 = vmatprep.subr.bf16.mxu0 0
      %1513 = vmatpush1.bf16.msra.mxu0 0
      %1514 = vmatprep.subr.bf16.mxu0 0
      %1515 = vmatpush1.bf16.msra.mxu0 0
      %1516 = vmatprep.subr.bf16.mxu0 0
      %1517 = vmatpush1.bf16.msra.mxu0 0
      %1518 = vmatprep.subr.bf16.mxu0 0
      %1519 = vmatpush1.bf16.msra.mxu0 0
      %1520 = vmatprep.subr.bf16.mxu0 0
      %1521 = vmatpush1.bf16.msra.mxu0 0
      %1522 = vmatprep.subr.bf16.mxu0 0
      %1523 = vmatpush1.bf16.msra.mxu0 0
      %1524 = vmatprep.subr.bf16.mxu0 0
      %1525 = vmatpush1.bf16.msra.mxu0 0
      %1526 = vmatprep.subr.bf16.mxu0 0
      %1527 = vmatpush1.bf16.msra.mxu0 0
      %1528 = vmatprep.subr.bf16.mxu0 0
      %1529 = vmatpush1.bf16.msra.mxu0 0
      %1530 = vmatprep.mubr.bf16.mxu0 0
      %1531 = vmatmul.mubr.bf16.gmra.mrb[0].mxu0 %v1493
      %v1532 = vpop.f32.mrb[0].mxu0
      %v1533 = vadd.f32 0.0, %v1532
      %v1534 = vpop.f32.mrb[0].mxu0
      %v1535 = vpop.f32.mrb[0].mxu0
      %v1536 = vpop.f32.mrb[0].mxu0
      %1537 = vdwg.mxu0
      %1538 = vrot.lane.b32.xlu0 %v463, 64
      %v1539 = vpop.permute.xlu0 %1538
      %v1541 = vsel %vm471, %v1196, 0
      %v1544 = vsel %vm1206, %v1539, 0
      %1546 = vmatprep.subr.bf16.mxu0 0
      %1547 = vmatpush1.bf16.msra.mxu0 %v1544
      %1548 = vmatprep.subr.bf16.mxu0 0
      %1549 = vmatpush1.bf16.msra.mxu0 0
      %1550 = vmatprep.subr.bf16.mxu0 0
      %1551 = vmatpush1.bf16.msra.mxu0 0
      %1552 = vmatprep.subr.bf16.mxu0 0
      %1553 = vmatpush1.bf16.msra.mxu0 0
      %1554 = vmatprep.subr.bf16.mxu0 0
      %1555 = vmatpush1.bf16.msra.mxu0 0
      %1556 = vmatprep.subr.bf16.mxu0 0
      %1557 = vmatpush1.bf16.msra.mxu0 0
      %1558 = vmatprep.subr.bf16.mxu0 0
      %1559 = vmatpush1.bf16.msra.mxu0 0
      %1560 = vmatprep.subr.bf16.mxu0 0
      %1561 = vmatpush1.bf16.msra.mxu0 0
      %1562 = vmatprep.subr.bf16.mxu0 0
      %1563 = vmatpush1.bf16.msra.mxu0 0
      %1564 = vmatprep.subr.bf16.mxu0 0
      %1565 = vmatpush1.bf16.msra.mxu0 0
      %1566 = vmatprep.subr.bf16.mxu0 0
      %1567 = vmatpush1.bf16.msra.mxu0 0
      %1568 = vmatprep.subr.bf16.mxu0 0
      %1569 = vmatpush1.bf16.msra.mxu0 0
      %1570 = vmatprep.subr.bf16.mxu0 0
      %1571 = vmatpush1.bf16.msra.mxu0 0
      %1572 = vmatprep.subr.bf16.mxu0 0
      %1573 = vmatpush1.bf16.msra.mxu0 0
      %1574 = vmatprep.subr.bf16.mxu0 0
      %1575 = vmatpush1.bf16.msra.mxu0 0
      %1576 = vmatprep.subr.bf16.mxu0 0
      %1577 = vmatpush1.bf16.msra.mxu0 0
      %1578 = vmatprep.mubr.bf16.mxu0 0
      %1579 = vmatmul.mubr.bf16.gmra.mrb[0].mxu0 %v1541
      %v1580 = vpop.f32.mrb[0].mxu0
      %v1581 = vadd.f32 0.0, %v1580
      %v1582 = vpop.f32.mrb[0].mxu0
      %v1583 = vpop.f32.mrb[0].mxu0
      %v1584 = vpop.f32.mrb[0].mxu0
      %1585 = vdwg.mxu0
      %1586 = vrot.lane.b32.xlu0 %v464, 64
      %v1587 = vpop.permute.xlu0 %1586
      %v1589 = vsel %vm471, %v1197, 0
      %v1592 = vsel %vm1206, %v1587, 0
      %1594 = vmatprep.subr.bf16.mxu0 0
      %1595 = vmatpush1.bf16.msra.mxu0 %v1592
      %1596 = vmatprep.subr.bf16.mxu0 0
      %1597 = vmatpush1.bf16.msra.mxu0 0
      %1598 = vmatprep.subr.bf16.mxu0 0
      %1599 = vmatpush1.bf16.msra.mxu0 0
      %1600 = vmatprep.subr.bf16.mxu0 0
      %1601 = vmatpush1.bf16.msra.mxu0 0
      %1602 = vmatprep.subr.bf16.mxu0 0
      %1603 = vmatpush1.bf16.msra.mxu0 0
      %1604 = vmatprep.subr.bf16.mxu0 0
      %1605 = vmatpush1.bf16.msra.mxu0 0
      %1606 = vmatprep.subr.bf16.mxu0 0
      %1607 = vmatpush1.bf16.msra.mxu0 0
      %1608 = vmatprep.subr.bf16.mxu0 0
      %1609 = vmatpush1.bf16.msra.mxu0 0
      %1610 = vmatprep.subr.bf16.mxu0 0
      %1611 = vmatpush1.bf16.msra.mxu0 0
      %1612 = vmatprep.subr.bf16.mxu0 0
      %1613 = vmatpush1.bf16.msra.mxu0 0
      %1614 = vmatprep.subr.bf16.mxu0 0
      %1615 = vmatpush1.bf16.msra.mxu0 0
      %1616 = vmatprep.subr.bf16.mxu0 0
      %1617 = vmatpush1.bf16.msra.mxu0 0
      %1618 = vmatprep.subr.bf16.mxu0 0
      %1619 = vmatpush1.bf16.msra.mxu0 0
      %1620 = vmatprep.subr.bf16.mxu0 0
      %1621 = vmatpush1.bf16.msra.mxu0 0
      %1622 = vmatprep.subr.bf16.mxu0 0
      %1623 = vmatpush1.bf16.msra.mxu0 0
      %1624 = vmatprep.subr.bf16.mxu0 0
      %1625 = vmatpush1.bf16.msra.mxu0 0
      %1626 = vmatprep.mubr.bf16.mxu0 0
      %1627 = vmatmul.mubr.bf16.gmra.mrb[0].mxu0 %v1589
      %v1628 = vpop.f32.mrb[0].mxu0
      %v1629 = vadd.f32 0.0, %v1628
      %v1630 = vpop.f32.mrb[0].mxu0
      %v1631 = vpop.f32.mrb[0].mxu0
      %v1632 = vpop.f32.mrb[0].mxu0
      %1633 = vdwg.mxu0
      %1634 = vrot.lane.b32.xlu0 %v465, 64
      %v1635 = vpop.permute.xlu0 %1634
      %v1637 = vsel %vm471, %v1198, 0
      %v1640 = vsel %vm1206, %v1635, 0
      %1642 = vmatprep.subr.bf16.mxu0 0
      %1643 = vmatpush1.bf16.msra.mxu0 %v1640
      %1644 = vmatprep.subr.bf16.mxu0 0
      %1645 = vmatpush1.bf16.msra.mxu0 0
      %1646 = vmatprep.subr.bf16.mxu0 0
      %1647 = vmatpush1.bf16.msra.mxu0 0
      %1648 = vmatprep.subr.bf16.mxu0 0
      %1649 = vmatpush1.bf16.msra.mxu0 0
      %1650 = vmatprep.subr.bf16.mxu0 0
      %1651 = vmatpush1.bf16.msra.mxu0 0
      %1652 = vmatprep.subr.bf16.mxu0 0
      %1653 = vmatpush1.bf16.msra.mxu0 0
      %1654 = vmatprep.subr.bf16.mxu0 0
      %1655 = vmatpush1.bf16.msra.mxu0 0
      %1656 = vmatprep.subr.bf16.mxu0 0
      %1657 = vmatpush1.bf16.msra.mxu0 0
      %1658 = vmatprep.subr.bf16.mxu0 0
      %1659 = vmatpush1.bf16.msra.mxu0 0
      %1660 = vmatprep.subr.bf16.mxu0 0
      %1661 = vmatpush1.bf16.msra.mxu0 0
      %1662 = vmatprep.subr.bf16.mxu0 0
      %1663 = vmatpush1.bf16.msra.mxu0 0
      %1664 = vmatprep.subr.bf16.mxu0 0
      %1665 = vmatpush1.bf16.msra.mxu0 0
      %1666 = vmatprep.subr.bf16.mxu0 0
      %1667 = vmatpush1.bf16.msra.mxu0 0
      %1668 = vmatprep.subr.bf16.mxu0 0
      %1669 = vmatpush1.bf16.msra.mxu0 0
      %1670 = vmatprep.subr.bf16.mxu0 0
      %1671 = vmatpush1.bf16.msra.mxu0 0
      %1672 = vmatprep.subr.bf16.mxu0 0
      %1673 = vmatpush1.bf16.msra.mxu0 0
      %1674 = vmatprep.mubr.bf16.mxu0 0
      %1675 = vmatmul.mubr.bf16.gmra.mrb[0].mxu0 %v1637
      %v1676 = vpop.f32.mrb[0].mxu0
      %v1677 = vadd.f32 0.0, %v1676
      %v1678 = vpop.f32.mrb[0].mxu0
      %v1679 = vpop.f32.mrb[0].mxu0
      %v1680 = vpop.f32.mrb[0].mxu0
      %1681 = vdwg.mxu0
      %1682 = vrot.lane.b32.xlu0 %v466, 64
      %v1683 = vpop.permute.xlu0 %1682
      %v1685 = vsel %vm471, %v1199, 0
      %v1688 = vsel %vm1206, %v1683, 0
      %1690 = vmatprep.subr.bf16.mxu0 0
      %1691 = vmatpush1.bf16.msra.mxu0 %v1688
      %1692 = vmatprep.subr.bf16.mxu0 0
      %1693 = vmatpush1.bf16.msra.mxu0 0
      %1694 = vmatprep.subr.bf16.mxu0 0
      %1695 = vmatpush1.bf16.msra.mxu0 0
      %1696 = vmatprep.subr.bf16.mxu0 0
      %1697 = vmatpush1.bf16.msra.mxu0 0
      %1698 = vmatprep.subr.bf16.mxu0 0
      %1699 = vmatpush1.bf16.msra.mxu0 0
      %1700 = vmatprep.subr.bf16.mxu0 0
      %1701 = vmatpush1.bf16.msra.mxu0 0
      %1702 = vmatprep.subr.bf16.mxu0 0
      %1703 = vmatpush1.bf16.msra.mxu0 0
      %1704 = vmatprep.subr.bf16.mxu0 0
      %1705 = vmatpush1.bf16.msra.mxu0 0
      %1706 = vmatprep.subr.bf16.mxu0 0
      %1707 = vmatpush1.bf16.msra.mxu0 0
      %1708 = vmatprep.subr.bf16.mxu0 0
      %1709 = vmatpush1.bf16.msra.mxu0 0
      %1710 = vmatprep.subr.bf16.mxu0 0
      %1711 = vmatpush1.bf16.msra.mxu0 0
      %1712 = vmatprep.subr.bf16.mxu0 0
      %1713 = vmatpush1.bf16.msra.mxu0 0
      %1714 = vmatprep.subr.bf16.mxu0 0
      %1715 = vmatpush1.bf16.msra.mxu0 0
      %1716 = vmatprep.subr.bf16.mxu0 0
      %1717 = vmatpush1.bf16.msra.mxu0 0
      %1718 = vmatprep.subr.bf16.mxu0 0
      %1719 = vmatpush1.bf16.msra.mxu0 0
      %1720 = vmatprep.subr.bf16.mxu0 0
      %1721 = vmatpush1.bf16.msra.mxu0 0
      %1722 = vmatprep.mubr.bf16.mxu0 0
      %1723 = vmatmul.mubr.bf16.gmra.mrb[0].mxu0 %v1685
      %v1724 = vpop.f32.mrb[0].mxu0
      %v1725 = vadd.f32 0.0, %v1724
      %v1726 = vpop.f32.mrb[0].mxu0
      %v1727 = vpop.f32.mrb[0].mxu0
      %v1728 = vpop.f32.mrb[0].mxu0
      %1729 = vdwg.mxu0
      %1730 = vrot.lane.b32.xlu0 %v467, 64
      %v1731 = vpop.permute.xlu0 %1730
      %v1733 = vsel %vm471, %v1200, 0
      %v1736 = vsel %vm1206, %v1731, 0
      %1738 = vmatprep.subr.bf16.mxu0 0
      %1739 = vmatpush1.bf16.msra.mxu0 %v1736
      %1740 = vmatprep.subr.bf16.mxu0 0
      %1741 = vmatpush1.bf16.msra.mxu0 0
      %1742 = vmatprep.subr.bf16.mxu0 0
      %1743 = vmatpush1.bf16.msra.mxu0 0
      %1744 = vmatprep.subr.bf16.mxu0 0
      %1745 = vmatpush1.bf16.msra.mxu0 0
      %1746 = vmatprep.subr.bf16.mxu0 0
      %1747 = vmatpush1.bf16.msra.mxu0 0
      %1748 = vmatprep.subr.bf16.mxu0 0
      %1749 = vmatpush1.bf16.msra.mxu0 0
      %1750 = vmatprep.subr.bf16.mxu0 0
      %1751 = vmatpush1.bf16.msra.mxu0 0
      %1752 = vmatprep.subr.bf16.mxu0 0
      %1753 = vmatpush1.bf16.msra.mxu0 0
      %1754 = vmatprep.subr.bf16.mxu0 0
      %1755 = vmatpush1.bf16.msra.mxu0 0
      %1756 = vmatprep.subr.bf16.mxu0 0
      %1757 = vmatpush1.bf16.msra.mxu0 0
      %1758 = vmatprep.subr.bf16.mxu0 0
      %1759 = vmatpush1.bf16.msra.mxu0 0
      %1760 = vmatprep.subr.bf16.mxu0 0
      %1761 = vmatpush1.bf16.msra.mxu0 0
      %1762 = vmatprep.subr.bf16.mxu0 0
      %1763 = vmatpush1.bf16.msra.mxu0 0
      %1764 = vmatprep.subr.bf16.mxu0 0
      %1765 = vmatpush1.bf16.msra.mxu0 0
      %1766 = vmatprep.subr.bf16.mxu0 0
      %1767 = vmatpush1.bf16.msra.mxu0 0
      %1768 = vmatprep.subr.bf16.mxu0 0
      %1769 = vmatpush1.bf16.msra.mxu0 0
      %1770 = vmatprep.mubr.bf16.mxu0 0
      %1771 = vmatmul.mubr.bf16.gmra.mrb[0].mxu0 %v1733
      %v1772 = vpop.f32.mrb[0].mxu0
      %v1773 = vadd.f32 0.0, %v1772
      %v1774 = vpop.f32.mrb[0].mxu0
      %v1775 = vpop.f32.mrb[0].mxu0
      %v1776 = vpop.f32.mrb[0].mxu0
      %1777 = vdwg.mxu0
      %1781 = vrot.lane.b32.xlu0 %v1389, 8
      %v1782 = vpop.permute.xlu0 %1781
      %1783 = vrot.lane.b32.xlu0 %v1437, 8
      %v1784 = vpop.permute.xlu0 %1783
      %1785 = vrot.lane.b32.xlu0 %v1485, 8
      %v1786 = vpop.permute.xlu0 %1785
      %1793 = vrot.lane.b32.xlu0 %v1533, 16
      %v1794 = vpop.permute.xlu0 %1793
      %1795 = vrot.lane.b32.xlu0 %v1581, 16
      %v1796 = vpop.permute.xlu0 %1795
      %1797 = vrot.lane.b32.xlu0 %v1629, 16
      %v1798 = vpop.permute.xlu0 %1797
      %1805 = vrot.lane.b32.xlu0 %v1677, 24
      %v1806 = vpop.permute.xlu0 %1805
      %1807 = vrot.lane.b32.xlu0 %v1725, 24
      %v1808 = vpop.permute.xlu0 %1807
      %1809 = vrot.lane.b32.xlu0 %v1773, 24
      %v1810 = vpop.permute.xlu0 %1809
      %v1814 = vsel %vm471, %v1245, %v1782
      %v1815 = vsel %vm471, %v1293, %v1784
      %v1816 = vsel %vm471, %v1341, %v1786
      %vm1817 = vcmask 130048
      %v1818 = vsel %vm1817, %v1814, %v1794
      %v1819 = vsel %vm1817, %v1815, %v1796
      %v1820 = vsel %vm1817, %v1816, %v1798
      %vm1821 = vcmask 195584
      %v1822 = vsel %vm1821, %v1818, %v1806
      %v1823 = vsel %vm1821, %v1819, %v1808
      %v1824 = vsel %vm1821, %v1820, %v1810
      %v1825 = vpack.c.bf16 %v1823, %v1822
      %v1826 = vpack.c.bf16 %v1824, %v1824
      %v1827 = vld [vmem:[%s3] sm:$0xf]
      %v1828 = vld [vmem:[%s3 + $0x4] sm:$0xf]
      %v1829 = vld [vmem:[%s3 + $0x8] sm:$0xf]
      %v1830 = vld [vmem:[%s3 + $0xc] sm:$0xf]
      %v1831 = vld [vmem:[%s4] sm:$0x1]
      %v1833 = vlaneseq
      %v1834 = vshrl.u32 %v1833, 7
      %v1835 = vsub.s32 0, %v1834
      %v1836 = vrot.slane %v1831, %v1835
      %v1842 = vunpack.c.l.b16 %v1827
      %v1843 = vunpack.c.l.b16 %v1828
      %v1844 = vunpack.c.l.b16 %v1829
      %v1845 = vunpack.c.l.b16 %v1830
      %v1846 = vpack.c.b16 %v1843, %v1842
      %v1847 = vpack.c.b16 %v1845, %v1844
      %v1851 = vsel %vm365, %v1825, 0
      %v1854 = vsel %vm365, %v1826, 0
      %1856 = vmatprep.subr.bf16.mxu0 0
      %1857 = vmatpush1.bf16.msra.mxu0 %v1846
      %1858 = vmatprep.subr.bf16.mxu0 0
      %1859 = vmatpush1.bf16.msra.mxu0 %v1847
      %1860 = vmatprep.subr.bf16.mxu0 0
      %1861 = vmatpush1.bf16.msra.mxu0 0
      %1862 = vmatprep.subr.bf16.mxu0 0
      %1863 = vmatpush1.bf16.msra.mxu0 0
      %1864 = vmatprep.subr.bf16.mxu0 0
      %1865 = vmatpush1.bf16.msra.mxu0 0
      %1866 = vmatprep.subr.bf16.mxu0 0
      %1867 = vmatpush1.bf16.msra.mxu0 0
      %1868 = vmatprep.subr.bf16.mxu0 0
      %1869 = vmatpush1.bf16.msra.mxu0 0
      %1870 = vmatprep.subr.bf16.mxu0 0
      %1871 = vmatpush1.bf16.msra.mxu0 0
      %1872 = vmatprep.subr.bf16.mxu0 0
      %1873 = vmatpush1.bf16.msra.mxu0 0
      %1874 = vmatprep.subr.bf16.mxu0 0
      %1875 = vmatpush1.bf16.msra.mxu0 0
      %1876 = vmatprep.subr.bf16.mxu0 0
      %1877 = vmatpush1.bf16.msra.mxu0 0
      %1878 = vmatprep.subr.bf16.mxu0 0
      %1879 = vmatpush1.bf16.msra.mxu0 0
      %1880 = vmatprep.subr.bf16.mxu0 0
      %1881 = vmatpush1.bf16.msra.mxu0 0
      %1882 = vmatprep.subr.bf16.mxu0 0
      %1883 = vmatpush1.bf16.msra.mxu0 0
      %1884 = vmatprep.subr.bf16.mxu0 0
      %1885 = vmatpush1.bf16.msra.mxu0 0
      %1886 = vmatprep.subr.bf16.mxu0 0
      %1887 = vmatpush1.bf16.msra.mxu0 0
      %1888 = vmatprep.mubr.bf16.mxu0 0
      %1889 = vmatmul.mubr.bf16.gmra.mrb[0].mxu0 %v1851
      %v1890 = vpop.f32.mrb[0].mxu0
      %v1891 = vadd.f32 %v1836, %v1890
      %v1892 = vpop.f32.mrb[0].mxu0
      %v1893 = vpop.f32.mrb[0].mxu0
      %v1894 = vadd.f32 %v1836, %v1893
      %v1895 = vpop.f32.mrb[0].mxu0
      %1896 = vmatprep.mubr.bf16.mxu0 0
      %1897 = vmatmul.mubr.bf16.gmra.mrb[0].mxu0 %v1854
      %v1898 = vpop.f32.mrb[0].mxu0
      %v1899 = vadd.f32 %v1836, %v1898
      %v1900 = vpop.f32.mrb[0].mxu0
      %v1901 = vpop.f32.mrb[0].mxu0
      %v1902 = vpop.f32.mrb[0].mxu0
      %1903 = vdwg.mxu0
      %v1904 = vadd.f32 %v1891, %v337
      %v1905 = vadd.f32 %v1894, %v338
      %v1906 = vadd.f32 %v1899, %v339
      %v1907 = vpack.c.bf16 %v1905, %v1904
      %v1908 = vpack.c.bf16 %v1906, %v1906
      %v1909 = vld [vmem:[%s5] sm:$0xf]
      %v1910 = vld [vmem:[%s5 + $0x4] sm:$0xf]
      %v1911 = vld [vmem:[%s5 + $0x8] sm:$0xf]
      %v1912 = vld [vmem:[%s5 + $0xc] sm:$0xf]
      %v1913 = vld [vmem:[%s6] sm:$0x1]
      %v1915 = vlaneseq
      %v1916 = vshrl.u32 %v1915, 7
      %v1917 = vsub.s32 0, %v1916
      %v1918 = vrot.slane %v1913, %v1917
      %v1924 = vunpack.c.l.b16 %v1909
      %v1925 = vunpack.c.l.b16 %v1910
      %v1926 = vunpack.c.l.b16 %v1911
      %v1927 = vunpack.c.l.b16 %v1912
      %v1928 = vpack.c.b16 %v1925, %v1924
      %v1929 = vpack.c.b16 %v1927, %v1926
      %v1933 = vsel %vm365, %v1907, 0
      %v1936 = vsel %vm365, %v1908, 0
      %1938 = vmatprep.subr.bf16.mxu0 0
      %1939 = vmatpush1.bf16.msra.mxu0 %v1928
      %1940 = vmatprep.subr.bf16.mxu0 0
      %1941 = vmatpush1.bf16.msra.mxu0 %v1929
      %1942 = vmatprep.subr.bf16.mxu0 0
      %1943 = vmatpush1.bf16.msra.mxu0 0
      %1944 = vmatprep.subr.bf16.mxu0 0
      %1945 = vmatpush1.bf16.msra.mxu0 0
      %1946 = vmatprep.subr.bf16.mxu0 0
      %1947 = vmatpush1.bf16.msra.mxu0 0
      %1948 = vmatprep.subr.bf16.mxu0 0
      %1949 = vmatpush1.bf16.msra.mxu0 0
      %1950 = vmatprep.subr.bf16.mxu0 0
      %1951 = vmatpush1.bf16.msra.mxu0 0
      %1952 = vmatprep.subr.bf16.mxu0 0
      %1953 = vmatpush1.bf16.msra.mxu0 0
      %1954 = vmatprep.subr.bf16.mxu0 0
      %1955 = vmatpush1.bf16.msra.mxu0 0
      %1956 = vmatprep.subr.bf16.mxu0 0
      %1957 = vmatpush1.bf16.msra.mxu0 0
      %1958 = vmatprep.subr.bf16.mxu0 0
      %1959 = vmatpush1.bf16.msra.mxu0 0
      %1960 = vmatprep.subr.bf16.mxu0 0
      %1961 = vmatpush1.bf16.msra.mxu0 0
      %1962 = vmatprep.subr.bf16.mxu0 0
      %1963 = vmatpush1.bf16.msra.mxu0 0
      %1964 = vmatprep.subr.bf16.mxu0 0
      %1965 = vmatpush1.bf16.msra.mxu0 0
      %1966 = vmatprep.subr.bf16.mxu0 0
      %1967 = vmatpush1.bf16.msra.mxu0 0
      %1968 = vmatprep.subr.bf16.mxu0 0
      %1969 = vmatpush1.bf16.msra.mxu0 0
      %1970 = vmatprep.mubr.bf16.mxu0 0
      %1971 = vmatmul.mubr.bf16.gmra.mrb[0].mxu0 %v1933
      %v1972 = vpop.f32.mrb[0].mxu0
      %v1973 = vadd.f32 %v1918, %v1972
      %v1974 = vpop.f32.mrb[0].mxu0
      %v1975 = vpop.f32.mrb[0].mxu0
      %v1976 = vadd.f32 %v1918, %v1975
      %v1977 = vpop.f32.mrb[0].mxu0
      %1978 = vmatprep.mubr.bf16.mxu0 0
      %1979 = vmatmul.mubr.bf16.gmra.mrb[0].mxu0 %v1936
      %v1980 = vpop.f32.mrb[0].mxu0
      %v1981 = vadd.f32 %v1918, %v1980
      %v1982 = vpop.f32.mrb[0].mxu0
      %v1983 = vpop.f32.mrb[0].mxu0
      %v1984 = vpop.f32.mrb[0].mxu0
      %1985 = vdwg.mxu0
      %v1986 = vmax.f32 %v1973, 0.0
      %v1987 = vmax.f32 %v1976, 0.0
      %v1988 = vmax.f32 %v1981, 0.0
      %v1989 = vpack.c.bf16 %v1987, %v1986
      %v1990 = vpack.c.bf16 %v1988, %v1988
      %v1991 = vld [vmem:[%s7] sm:$0xf]
      %v1992 = vld [vmem:[%s7 + $0x4] sm:$0xf]
      %v1993 = vld [vmem:[%s7 + $0x8] sm:$0xf]
      %v1994 = vld [vmem:[%s7 + $0xc] sm:$0xf]
      %v1995 = vld [vmem:[%s7 + $0x10] sm:$0xf]
      %v1996 = vld [vmem:[%s7 + $0x14] sm:$0xf]
      %v1997 = vld [vmem:[%s7 + $0x18] sm:$0xf]
      %v1998 = vld [vmem:[%s7 + $0x1c] sm:$0xf]
      %v1999 = vld [vmem:[%s8] sm:$0x1]
      %v2001 = vlaneseq
      %v2002 = vshrl.u32 %v2001, 7
      %v2003 = vsub.s32 0, %v2002
      %v2004 = vrot.slane %v1999, %v2003
      %v2014 = vunpack.c.l.b16 %v1991
      %v2015 = vunpack.c.l.b16 %v1992
      %v2016 = vunpack.c.l.b16 %v1993
      %v2017 = vunpack.c.l.b16 %v1994
      %v2018 = vunpack.c.l.b16 %v1995
      %v2019 = vunpack.c.l.b16 %v1996
      %v2020 = vunpack.c.l.b16 %v1997
      %v2021 = vunpack.c.l.b16 %v1998
      %v2022 = vpack.c.b16 %v2015, %v2014
      %v2023 = vpack.c.b16 %v2017, %v2016
      %v2024 = vpack.c.b16 %v2019, %v2018
      %v2025 = vpack.c.b16 %v2021, %v2020
      %vm2030 = vcmask 523264
      %v2032 = vsel %vm2030, %v1989, 0
      %v2035 = vsel %vm2030, %v1990, 0
      %2037 = vmatprep.subr.bf16.mxu0 0
      %2038 = vmatpush1.bf16.msra.mxu0 %v2022
      %2039 = vmatprep.subr.bf16.mxu0 0
      %2040 = vmatpush1.bf16.msra.mxu0 %v2023
      %2041 = vmatprep.subr.bf16.mxu0 0
      %2042 = vmatpush1.bf16.msra.mxu0 %v2024
      %2043 = vmatprep.subr.bf16.mxu0 0
      %2044 = vmatpush1.bf16.msra.mxu0 %v2025
      %2045 = vmatprep.subr.bf16.mxu0 0
      %2046 = vmatpush1.bf16.msra.mxu0 0
      %2047 = vmatprep.subr.bf16.mxu0 0
      %2048 = vmatpush1.bf16.msra.mxu0 0
      %2049 = vmatprep.subr.bf16.mxu0 0
      %2050 = vmatpush1.bf16.msra.mxu0 0
      %2051 = vmatprep.subr.bf16.mxu0 0
      %2052 = vmatpush1.bf16.msra.mxu0 0
      %2053 = vmatprep.subr.bf16.mxu0 0
      %2054 = vmatpush1.bf16.msra.mxu0 0
      %2055 = vmatprep.subr.bf16.mxu0 0
      %2056 = vmatpush1.bf16.msra.mxu0 0
      %2057 = vmatprep.subr.bf16.mxu0 0
      %2058 = vmatpush1.bf16.msra.mxu0 0
      %2059 = vmatprep.subr.bf16.mxu0 0
      %2060 = vmatpush1.bf16.msra.mxu0 0
      %2061 = vmatprep.subr.bf16.mxu0 0
      %2062 = vmatpush1.bf16.msra.mxu0 0
      %2063 = vmatprep.subr.bf16.mxu0 0
      %2064 = vmatpush1.bf16.msra.mxu0 0
      %2065 = vmatprep.subr.bf16.mxu0 0
      %2066 = vmatpush1.bf16.msra.mxu0 0
      %2067 = vmatprep.subr.bf16.mxu0 0
      %2068 = vmatpush1.bf16.msra.mxu0 0
      %2069 = vmatprep.mubr.bf16.mxu0 0
      %2070 = vmatmul.mubr.bf16.gmra.mrb[0].mxu0 %v2032
      %v2071 = vpop.f32.mrb[0].mxu0
      %v2072 = vadd.f32 %v2004, %v2071
      %v2073 = vpop.f32.mrb[0].mxu0
      %v2074 = vpop.f32.mrb[0].mxu0
      %v2075 = vadd.f32 %v2004, %v2074
      %v2076 = vpop.f32.mrb[0].mxu0
      %2077 = vmatprep.mubr.bf16.mxu0 0
      %2078 = vmatmul.mubr.bf16.gmra.mrb[0].mxu0 %v2035
      %v2079 = vpop.f32.mrb[0].mxu0
      %v2080 = vadd.f32 %v2004, %v2079
      %v2081 = vpop.f32.mrb[0].mxu0
      %v2082 = vpop.f32.mrb[0].mxu0
      %v2083 = vpop.f32.mrb[0].mxu0
      %2084 = vdwg.mxu0
      %v2085 = vadd.f32 %v2072, %v1904
      %v2086 = vadd.f32 %v2075, %v1905
      %v2087 = vadd.f32 %v2080, %v1906
      %2088 = vst.msk [vmem:[%s334] sm:$0xff] %vm365, %v2085
      %2089 = vst.msk [vmem:[%s334 + $0x8] sm:$0xff] %vm365, %v2086
      %2090 = vst.msk [vmem:[%s334 + $0x10] sm:$0xff] %vm365, %v2087
      %s2091 = smul.u32 3, %s20
      %p2092 = scmp.lt.s32.totalorder %s2091, 5
      %s2093 = scalar_select %p2092, %s2091, 5
      %s2094 = smul.addr %s2093, 8
      %s2095 = scalar_lea.vmem %s9, %s2094
      // Predicated region
      $region57: #{tpu_custom_call.1} parent=55 // pred_check
        %p2096 = pneg %p232
      $region58: #{tpu_custom_call.1} parent=55 // pred_check_branch
        %2098 = sbr.rel (%p2096) target = $region60
      $region59: #{tpu_custom_call.1} parent=55 // pred_region
        %s2099 = smul.u32 3, %s20
      $region60: #{tpu_custom_call.1} parent=55 // pred_fallthru
        _
    $region56: #{tpu_custom_call.1} parent=5 // pred_fallthru
      _
    %p2100 = scmp.le.s32.totalorder 2, %s15
    // Predicated region
    $region61: #{tpu_custom_call.1} parent=5 // pred_check
      %p2101 = pneg %p2100
    $region62: #{tpu_custom_call.1} parent=5 // pred_check_branch
      %2103 = sbr.rel (%p2101) target = $region64
    $region63: #{tpu_custom_call.1} parent=5 // pred_region
      %s2104 = ssub.s32 %s15, 2
      // Predicated region
      $region65: #{tpu_custom_call.1} parent=63 // pred_check
        %p2105 = pneg %p238
      $region66: #{tpu_custom_call.1} parent=63 // pred_check_branch
        %2107 = sbr.rel (%p2105) target = $region68
      $region67: #{tpu_custom_call.1} parent=63 // pred_region
        %s2108 = smul.u32 3, %s21
        %p2109 = scmp.lt.s32.totalorder %s2108, 5
        %s2110 = scalar_select %p2109, %s2108, 5
        %s2111 = smul.addr %s2110, 8
        %s2112 = scalar_lea.vmem %s9, %s2111
      $region68: #{tpu_custom_call.1} parent=63 // pred_fallthru
        _
    $region64: #{tpu_custom_call.1} parent=5 // pred_fallthru
      _
  $region6: #{tpu_custom_call.1} parent=0 // loop_footer
    %s19 = sadd.s32 1, %s15
  $region7: #{tpu_custom_call.1} parent=0 // loop_footer_branch
    %14 = sbr.rel target = $region3
  $region8: #{tpu_custom_call.1} parent=0 // loop_exit
    _

</llo_original>
